<compile_context>
chip_gen: v7x
topology: tpu7x:2x2x1
jax: 0.10.0
libtpu: 0.0.40
codegen_flags: <defaults>
</compile_context>

<pallas_src>
import functools

import jax
import jax.numpy as jnp
from jax.experimental import pallas as pl
from jax.experimental.pallas import tpu as pltpu


def _lstm_ae_kernel(x_ref,
                    wih_e_ref, whh_e_ref, b_e_ref,
                    w_e2l_ref, b_e2l_ref,
                    w_l2d_ref, b_l2d_ref,
                    whh_d_ref, b_d_ref,
                    w_out_ref, b_out_ref,
                    out_ref, z_ref,
                    xw_scr, hd_scr,
                    *, hidden_dim, unroll_threshold=16, loop_unroll=4):
    T, B, _ = x_ref.shape
    H = hidden_dim

    # Gates arrive in kernel order [i, f, o, g]: one sigmoid over the first 3H
    # columns, one tanh over the last H columns (2 EUP pushes instead of 4).
    def lstm_cell(h, c, gates):
        sfo = jax.nn.sigmoid(gates[:, :3 * H])
        g = jnp.tanh(gates[:, 3 * H:])
        i = sfo[:, :H]
        f = sfo[:, H:2 * H]
        o = sfo[:, 2 * H:]
        c_new = f * c + i * g
        h_new = o * jnp.tanh(c_new)
        return h_new, c_new

    # ---- hoist all non-recurrent encoder work out of the time loop ----------
    # input_size == 1, so x @ W_ih^T is just a broadcast multiply; biases folded
    # in here too.  (T, B, 1) * (1, 1, 4H) + (1, 1, 4H) -> (T, B, 4H).
    xw_scr[...] = (x_ref[...] * wih_e_ref[...][None, :, :]
                   + b_e_ref[...][None, :, :])

    whh_e = whh_e_ref[...]                      # (H, 4H)

    h = jnp.zeros((B, H), jnp.float32)
    c = jnp.zeros((B, H), jnp.float32)

    def enc_step(t, carry):
        h, c = carry
        gates = xw_scr[t] + jnp.dot(h, whh_e, preferred_element_type=jnp.float32)
        return lstm_cell(h, c, gates)

    if T <= unroll_threshold:                   # small T: static unroll
        for t in range(T):
            h, c = enc_step(t, (h, c))
    else:                                       # long T: bounded live ranges
        h, c = jax.lax.fori_loop(0, T, enc_step, (h, c), unroll=loop_unroll)

    # ---- latent projections -------------------------------------------------
    z = jnp.dot(h, w_e2l_ref[...], preferred_element_type=jnp.float32) + b_e2l_ref[...]
    z_ref[...] = z

    hd = jnp.dot(z, w_l2d_ref[...], preferred_element_type=jnp.float32) + b_l2d_ref[...]
    cd = jnp.zeros((B, H), jnp.float32)

    # ---- decoder LSTM (zero input: only recurrent term + fused biases) ------
    whh_d = whh_d_ref[...]                              # (H, 4H)
    b_d_b = jnp.broadcast_to(b_d_ref[...], (B, 4 * H))  # broadcast ONCE, hoisted

    def dec_step(t, carry):
        hd, cd = carry
        gates = jnp.dot(hd, whh_d, preferred_element_type=jnp.float32) + b_d_b
        hd, cd = lstm_cell(hd, cd, gates)
        hd_scr[t] = hd                                  # stash for batched proj
        return hd, cd

    if T <= unroll_threshold:
        for t in range(T):
            hd, cd = dec_step(t, (hd, cd))
    else:
        hd, cd = jax.lax.fori_loop(0, T, dec_step, (hd, cd), unroll=loop_unroll)

    # ---- single batched output projection after the loop --------------------
    # out_dim == 1, so one VPU multiply + lane reduction over all T*B rows.
    w_out_b = w_out_ref[...][None, :, :]                # (1, 1, H)
    out3 = jnp.sum(hd_scr[...] * w_out_b, axis=-1, keepdims=True)   # (T, B, 1)
    out_ref[...] = out3 + b_out_ref[...][None, :, :]


def init_params(key, hidden_dim=32, latent_dim=8):
    """PyTorch-style uniform(-1/sqrt(H), 1/sqrt(H)) init, PyTorch gate order."""
    H, L = hidden_dim, latent_dim
    bound = 1.0 / jnp.sqrt(jnp.float32(H))
    ks = jax.random.split(key, 16)
    u = lambda k, shape: jax.random.uniform(k, shape, jnp.float32, -bound, bound)

    return {
        # encoder LSTM (input_size = 1), stored pre-transposed, gates [i,f,g,o]
        "wih_e": u(ks[0], (1, 4 * H)),
        "whh_e": u(ks[1], (H, 4 * H)),
        "b_e":   u(ks[2], (1, 4 * H)) + u(ks[3], (1, 4 * H)),   # b_ih + b_hh
        # enc_to_latent: Linear(H, L)
        "w_e2l": u(ks[4], (H, L)),
        "b_e2l": u(ks[5], (1, L)),
        # latent_to_dec: Linear(L, H)
        "w_l2d": u(ks[6], (L, H)),
        "b_l2d": u(ks[7], (1, H)),
        # decoder LSTM (zero input: weight_ih unused, biases still count)
        "whh_d": u(ks[8], (H, 4 * H)),
        "b_d":   u(ks[9], (1, 4 * H)) + u(ks[10], (1, 4 * H)),  # b_ih + b_hh
        # out_proj: Linear(H, 1) -- PyTorch weight shape (1, H)
        "w_out": u(ks[11], (1, H)),
        "b_out": u(ks[12], (1, 1)),
    }


def _reorder_gate_cols(m, H):
    """PyTorch gate order [i, f, g, o] -> kernel order [i, f, o, g] (columns)."""
    return jnp.concatenate([m[:, :2 * H], m[:, 3 * H:4 * H], m[:, 2 * H:3 * H]],
                           axis=1)


def lstm_autoencoder_forward(x, params, hidden_dim=32, latent_dim=8, b_tile=8):
    """x: (B, seq_len, 1) f32 -> (out (B, seq_len, 1), z (B, latent_dim))."""
    B, T, F = x.shape
    assert F == 1
    H, L = hidden_dim, latent_dim

    # Pad batch to a multiple of the sublane tile; time-major layout so the
    # recurrence slices the leading axis only.
    B_pad = ((B + b_tile - 1) // b_tile) * b_tile
    x_tb = jnp.transpose(x, (1, 0, 2))                    # (T, B, 1)
    if B_pad != B:
        x_tb = jnp.pad(x_tb, ((0, 0), (0, B_pad - B), (0, 0)))

    # Reorder gate columns for the fused sigmoid/tanh in the kernel.
    wih_e = _reorder_gate_cols(params["wih_e"], H)
    whh_e = _reorder_gate_cols(params["whh_e"], H)
    b_e = _reorder_gate_cols(params["b_e"], H)
    whh_d = _reorder_gate_cols(params["whh_d"], H)
    b_d = _reorder_gate_cols(params["b_d"], H)

    kernel = functools.partial(_lstm_ae_kernel, hidden_dim=H)

    def rep(shape):   # weight replicated across the batch grid (all 2D)
        return pl.BlockSpec(shape, lambda b: (0, 0))

    out_tb, z_pad = pl.pallas_call(
        kernel,
        out_shape=(
            jax.ShapeDtypeStruct((T, B_pad, 1), jnp.float32),
            jax.ShapeDtypeStruct((B_pad, L), jnp.float32),
        ),
        grid=(B_pad // b_tile,),
        in_specs=[
            pl.BlockSpec((T, b_tile, 1), lambda b: (0, b, 0)),   # x (time-major)
            rep((1, 4 * H)),      # wih_e
            rep((H, 4 * H)),      # whh_e
            rep((1, 4 * H)),      # b_e
            rep((H, L)),          # w_e2l
            rep((1, L)),          # b_e2l
            rep((L, H)),          # w_l2d
            rep((1, H)),          # b_l2d
            rep((H, 4 * H)),      # whh_d
            rep((1, 4 * H)),      # b_d
            rep((1, H)),          # w_out (PyTorch (1, H))
            rep((1, 1)),          # b_out
        ],
        out_specs=(
            pl.BlockSpec((T, b_tile, 1), lambda b: (0, b, 0)),
            pl.BlockSpec((b_tile, L), lambda b: (b, 0)),
        ),
        scratch_shapes=[
            pltpu.VMEM((T, b_tile, 4 * H), jnp.float32),   # hoisted x*W_ih + b
            pltpu.VMEM((T, b_tile, H), jnp.float32),       # decoder hidden states
        ],
        compiler_params=pltpu.CompilerParams(
            dimension_semantics=("parallel",)),            # megacore on v7x
    )(
        x_tb,
        wih_e, whh_e, b_e,
        params["w_e2l"], params["b_e2l"],
        params["w_l2d"], params["b_l2d"],
        whh_d, b_d,
        params["w_out"], params["b_out"],
    )

    out = jnp.transpose(out_tb, (1, 0, 2))[:B]             # (B, T, 1)
    z = z_pad[:B]                                          # (B, L)
    return out, z


def _reference_forward(x, params, hidden_dim=32):
    """Pure-JAX reference mirroring the PyTorch LSTM equations (gate order i,f,g,o)."""
    H = hidden_dim
    B, T, _ = x.shape

    def cell(h, c, gates):
        i = jax.nn.sigmoid(gates[:, :H])
        f = jax.nn.sigmoid(gates[:, H:2 * H])
        g = jnp.tanh(gates[:, 2 * H:3 * H])
        o = jax.nn.sigmoid(gates[:, 3 * H:])
        c = f * c + i * g
        return o * jnp.tanh(c), c

    h = jnp.zeros((B, H)); c = jnp.zeros((B, H))
    for t in range(T):
        gates = x[:, t, :] * params["wih_e"] + h @ params["whh_e"] + params["b_e"]
        h, c = cell(h, c, gates)
    z = h @ params["w_e2l"] + params["b_e2l"]
    hd = z @ params["w_l2d"] + params["b_l2d"]
    cd = jnp.zeros((B, H))
    ys = []
    for t in range(T):
        gates = hd @ params["whh_d"] + params["b_d"]
        hd, cd = cell(hd, cd, gates)
        ys.append(hd @ params["w_out"].T + params["b_out"])   # (B, 1)
    return jnp.stack(ys, axis=1), z


if __name__ == "__main__":
    B, T, H, L = 2, 8, 32, 8
    key = jax.random.PRNGKey(0)
    k_x, k_p = jax.random.split(key)

    x = jax.random.normal(k_x, (B, T, 1), jnp.float32)
    params = init_params(k_p, hidden_dim=H, latent_dim=L)

    out, z = lstm_autoencoder_forward(x, params, hidden_dim=H, latent_dim=L)
    out = jax.block_until_ready(out)
    z = jax.block_until_ready(z)

    ref_out, ref_z = _reference_forward(x, params, hidden_dim=H)
    assert out.shape == (B, T, 1) and z.shape == (B, L)
    assert jnp.allclose(out[..., 0], ref_out[..., 0], atol=1e-4, rtol=1e-4)
    assert jnp.allclose(z, ref_z, atol=1e-4, rtol=1e-4)

    print("KERNEL_OK")
</pallas_src>

<mosaic_0001>
module attributes {stable_mosaic.version = 11 : i64} {
  func.func @_lstm_ae_kernel(%arg0: i32, %arg1: memref<8x8x1xf32, #tpu.memory_space<vmem>>, %arg2: memref<1x128xf32, #tpu.memory_space<vmem>>, %arg3: memref<32x128xf32, #tpu.memory_space<vmem>>, %arg4: memref<1x128xf32, #tpu.memory_space<vmem>>, %arg5: memref<32x8xf32, #tpu.memory_space<vmem>>, %arg6: memref<1x8xf32, #tpu.memory_space<vmem>>, %arg7: memref<8x32xf32, #tpu.memory_space<vmem>>, %arg8: memref<1x32xf32, #tpu.memory_space<vmem>>, %arg9: memref<32x128xf32, #tpu.memory_space<vmem>>, %arg10: memref<1x128xf32, #tpu.memory_space<vmem>>, %arg11: memref<1x32xf32, #tpu.memory_space<vmem>>, %arg12: memref<1x1xf32, #tpu.memory_space<vmem>>, %arg13: memref<8x8x1xf32, #tpu.memory_space<vmem>>, %arg14: memref<8x8xf32, #tpu.memory_space<vmem>>, %arg15: memref<8x8x128xf32, #tpu.memory_space<vmem>>, %arg16: memref<8x8x32xf32, #tpu.memory_space<vmem>>) attributes {dimension_semantics = [#tpu.dimension_semantics<parallel>], iteration_bounds = array<i64: 1>, scalar_prefetch = 0 : i64, scratch_operands = 2 : i64, tpu.core_type = #tpu.core_type<tc>, window_params = [{transform_indices = @transform_0, window_bounds = array<i64: 8, 8, 1>}, {pipeline_mode = #tpu.pipeline_mode<synchronous>, transform_indices = @transform_1, window_bounds = array<i64: 1, 128>}, {pipeline_mode = #tpu.pipeline_mode<synchronous>, transform_indices = @transform_2, window_bounds = array<i64: 32, 128>}, {pipeline_mode = #tpu.pipeline_mode<synchronous>, transform_indices = @transform_3, window_bounds = array<i64: 1, 128>}, {pipeline_mode = #tpu.pipeline_mode<synchronous>, transform_indices = @transform_4, window_bounds = array<i64: 32, 8>}, {pipeline_mode = #tpu.pipeline_mode<synchronous>, transform_indices = @transform_5, window_bounds = array<i64: 1, 8>}, {pipeline_mode = #tpu.pipeline_mode<synchronous>, transform_indices = @transform_6, window_bounds = array<i64: 8, 32>}, {pipeline_mode = #tpu.pipeline_mode<synchronous>, transform_indices = @transform_7, window_bounds = array<i64: 1, 32>}, {pipeline_mode = #tpu.pipeline_mode<synchronous>, transform_indices = @transform_8, window_bounds = array<i64: 32, 128>}, {pipeline_mode = #tpu.pipeline_mode<synchronous>, transform_indices = @transform_9, window_bounds = array<i64: 1, 128>}, {pipeline_mode = #tpu.pipeline_mode<synchronous>, transform_indices = @transform_10, window_bounds = array<i64: 1, 32>}, {pipeline_mode = #tpu.pipeline_mode<synchronous>, transform_indices = @transform_11, window_bounds = array<i64: 1, 1>}, {transform_indices = @transform_12, window_bounds = array<i64: 8, 8, 1>}, {transform_indices = @transform_13, window_bounds = array<i64: 8, 8>}]} {
    %c0 = arith.constant 0 : index
    %c0_0 = arith.constant 0 : index
    %c0_1 = arith.constant 0 : index
    %0 = vector.load %arg1[%c0, %c0_0, %c0_1] : memref<8x8x1xf32, #tpu.memory_space<vmem>>, vector<8x8x1xf32>
    %c0_2 = arith.constant 0 : index
    %c0_3 = arith.constant 0 : index
    %1 = vector.load %arg2[%c0_2, %c0_3] : memref<1x128xf32, #tpu.memory_space<vmem>>, vector<1x128xf32>
    %2 = vector.shape_cast %1 : vector<1x128xf32> to vector<1x1x128xf32>
    %3 = vector.broadcast %0 : vector<8x8x1xf32> to vector<8x8x128xf32>
    %4 = vector.broadcast %2 : vector<1x1x128xf32> to vector<8x8x128xf32>
    %5 = arith.mulf %3, %4 : vector<8x8x128xf32>
    %c0_4 = arith.constant 0 : index
    %c0_5 = arith.constant 0 : index
    %6 = vector.load %arg4[%c0_4, %c0_5] : memref<1x128xf32, #tpu.memory_space<vmem>>, vector<1x128xf32>
    %7 = vector.shape_cast %6 : vector<1x128xf32> to vector<1x1x128xf32>
    %8 = vector.broadcast %7 : vector<1x1x128xf32> to vector<8x8x128xf32>
    %9 = arith.addf %5, %8 : vector<8x8x128xf32>
    %c0_6 = arith.constant 0 : index
    %c0_7 = arith.constant 0 : index
    %c0_8 = arith.constant 0 : index
    %10 = vector.load %arg15[%c0_6, %c0_7, %c0_8] : memref<8x8x128xf32, #tpu.memory_space<vmem>>, vector<8x8x128xf32>
    tpu.vector_store %arg15[%c0_6, %c0_7, %c0_8], %9 {strides = array<i32>} : memref<8x8x128xf32, #tpu.memory_space<vmem>>, vector<8x8x128xf32>,
    %c0_9 = arith.constant 0 : index
    %c0_10 = arith.constant 0 : index
    %11 = vector.load %arg3[%c0_9, %c0_10] : memref<32x128xf32, #tpu.memory_space<vmem>>, vector<32x128xf32>
    %cst = arith.constant 0.000000e+00 : f32
    %12 = vector.broadcast %cst : f32 to vector<8x32xf32>
    %cst_11 = arith.constant 0.000000e+00 : f32
    %13 = vector.broadcast %cst_11 : f32 to vector<8x32xf32>
    %c0_12 = arith.constant 0 : index
    %c0_13 = arith.constant 0 : index
    %c0_14 = arith.constant 0 : index
    %14 = vector.load %arg15[%c0_12, %c0_13, %c0_14] : memref<8x8x128xf32, #tpu.memory_space<vmem>>, vector<1x8x128xf32>
    %15 = vector.shape_cast %14 : vector<1x8x128xf32> to vector<8x128xf32>
    %cst_15 = arith.constant dense<0.000000e+00> : vector<8x128xf32>
    %16 = tpu.matmul %12, %11, %cst_15 {dimension_numbers = #tpu.dot_dimension_numbers<[1], [0], [0], [1], [0, 0, 1, 1], [], []>} : vector<8x32xf32>, vector<32x128xf32>, vector<8x128xf32> -> vector<8x128xf32>
    %17 = arith.addf %15, %16 : vector<8x128xf32>
    %18 = vector.extract_strided_slice %17 {offsets = [0, 0], sizes = [8, 96], strides = [1, 1]} : vector<8x128xf32> to vector<8x96xf32>
    %19 = arith.negf %18 : vector<8x96xf32>
    %20 = math.exp %19 : vector<8x96xf32>
    %cst_16 = arith.constant 1.000000e+00 : f32
    %21 = vector.broadcast %cst_16 : f32 to vector<8x96xf32>
    %22 = arith.addf %21, %20 : vector<8x96xf32>
    %23 = arith.divf %21, %22 : vector<8x96xf32>
    %24 = vector.extract_strided_slice %17 {offsets = [0, 96], sizes = [8, 32], strides = [1, 1]} : vector<8x128xf32> to vector<8x32xf32>
    %25 = math.tanh %24 : vector<8x32xf32>
    %26 = vector.extract_strided_slice %23 {offsets = [0, 0], sizes = [8, 32], strides = [1, 1]} : vector<8x96xf32> to vector<8x32xf32>
    %27 = vector.extract_strided_slice %23 {offsets = [0, 32], sizes = [8, 32], strides = [1, 1]} : vector<8x96xf32> to vector<8x32xf32>
    %28 = vector.extract_strided_slice %23 {offsets = [0, 64], sizes = [8, 32], strides = [1, 1]} : vector<8x96xf32> to vector<8x32xf32>
    %29 = arith.mulf %27, %13 : vector<8x32xf32>
    %30 = arith.mulf %26, %25 : vector<8x32xf32>
    %31 = arith.addf %29, %30 : vector<8x32xf32>
    %32 = math.tanh %31 : vector<8x32xf32>
    %33 = arith.mulf %28, %32 : vector<8x32xf32>
    %c1 = arith.constant 1 : index
    %c0_17 = arith.constant 0 : index
    %c0_18 = arith.constant 0 : index
    %34 = vector.load %arg15[%c1, %c0_17, %c0_18] : memref<8x8x128xf32, #tpu.memory_space<vmem>>, vector<1x8x128xf32>
    %35 = vector.shape_cast %34 : vector<1x8x128xf32> to vector<8x128xf32>
    %cst_19 = arith.constant dense<0.000000e+00> : vector<8x128xf32>
    %36 = tpu.matmul %33, %11, %cst_19 {dimension_numbers = #tpu.dot_dimension_numbers<[1], [0], [0], [1], [0, 0, 1, 1], [], []>} : vector<8x32xf32>, vector<32x128xf32>, vector<8x128xf32> -> vector<8x128xf32>
    %37 = arith.addf %35, %36 : vector<8x128xf32>
    %38 = vector.extract_strided_slice %37 {offsets = [0, 0], sizes = [8, 96], strides = [1, 1]} : vector<8x128xf32> to vector<8x96xf32>
    %39 = arith.negf %38 : vector<8x96xf32>
    %40 = math.exp %39 : vector<8x96xf32>
    %cst_20 = arith.constant 1.000000e+00 : f32
    %41 = vector.broadcast %cst_20 : f32 to vector<8x96xf32>
    %42 = arith.addf %41, %40 : vector<8x96xf32>
    %43 = arith.divf %41, %42 : vector<8x96xf32>
    %44 = vector.extract_strided_slice %37 {offsets = [0, 96], sizes = [8, 32], strides = [1, 1]} : vector<8x128xf32> to vector<8x32xf32>
    %45 = math.tanh %44 : vector<8x32xf32>
    %46 = vector.extract_strided_slice %43 {offsets = [0, 0], sizes = [8, 32], strides = [1, 1]} : vector<8x96xf32> to vector<8x32xf32>
    %47 = vector.extract_strided_slice %43 {offsets = [0, 32], sizes = [8, 32], strides = [1, 1]} : vector<8x96xf32> to vector<8x32xf32>
    %48 = vector.extract_strided_slice %43 {offsets = [0, 64], sizes = [8, 32], strides = [1, 1]} : vector<8x96xf32> to vector<8x32xf32>
    %49 = arith.mulf %47, %31 : vector<8x32xf32>
    %50 = arith.mulf %46, %45 : vector<8x32xf32>
    %51 = arith.addf %49, %50 : vector<8x32xf32>
    %52 = math.tanh %51 : vector<8x32xf32>
    %53 = arith.mulf %48, %52 : vector<8x32xf32>
    %c2 = arith.constant 2 : index
    %c0_21 = arith.constant 0 : index
    %c0_22 = arith.constant 0 : index
    %54 = vector.load %arg15[%c2, %c0_21, %c0_22] : memref<8x8x128xf32, #tpu.memory_space<vmem>>, vector<1x8x128xf32>
    %55 = vector.shape_cast %54 : vector<1x8x128xf32> to vector<8x128xf32>
    %cst_23 = arith.constant dense<0.000000e+00> : vector<8x128xf32>
    %56 = tpu.matmul %53, %11, %cst_23 {dimension_numbers = #tpu.dot_dimension_numbers<[1], [0], [0], [1], [0, 0, 1, 1], [], []>} : vector<8x32xf32>, vector<32x128xf32>, vector<8x128xf32> -> vector<8x128xf32>
    %57 = arith.addf %55, %56 : vector<8x128xf32>
    %58 = vector.extract_strided_slice %57 {offsets = [0, 0], sizes = [8, 96], strides = [1, 1]} : vector<8x128xf32> to vector<8x96xf32>
    %59 = arith.negf %58 : vector<8x96xf32>
    %60 = math.exp %59 : vector<8x96xf32>
    %cst_24 = arith.constant 1.000000e+00 : f32
    %61 = vector.broadcast %cst_24 : f32 to vector<8x96xf32>
    %62 = arith.addf %61, %60 : vector<8x96xf32>
    %63 = arith.divf %61, %62 : vector<8x96xf32>
    %64 = vector.extract_strided_slice %57 {offsets = [0, 96], sizes = [8, 32], strides = [1, 1]} : vector<8x128xf32> to vector<8x32xf32>
    %65 = math.tanh %64 : vector<8x32xf32>
    %66 = vector.extract_strided_slice %63 {offsets = [0, 0], sizes = [8, 32], strides = [1, 1]} : vector<8x96xf32> to vector<8x32xf32>
    %67 = vector.extract_strided_slice %63 {offsets = [0, 32], sizes = [8, 32], strides = [1, 1]} : vector<8x96xf32> to vector<8x32xf32>
    %68 = vector.extract_strided_slice %63 {offsets = [0, 64], sizes = [8, 32], strides = [1, 1]} : vector<8x96xf32> to vector<8x32xf32>
    %69 = arith.mulf %67, %51 : vector<8x32xf32>
    %70 = arith.mulf %66, %65 : vector<8x32xf32>
    %71 = arith.addf %69, %70 : vector<8x32xf32>
    %72 = math.tanh %71 : vector<8x32xf32>
    %73 = arith.mulf %68, %72 : vector<8x32xf32>
    %c3 = arith.constant 3 : index
    %c0_25 = arith.constant 0 : index
    %c0_26 = arith.constant 0 : index
    %74 = vector.load %arg15[%c3, %c0_25, %c0_26] : memref<8x8x128xf32, #tpu.memory_space<vmem>>, vector<1x8x128xf32>
    %75 = vector.shape_cast %74 : vector<1x8x128xf32> to vector<8x128xf32>
    %cst_27 = arith.constant dense<0.000000e+00> : vector<8x128xf32>
    %76 = tpu.matmul %73, %11, %cst_27 {dimension_numbers = #tpu.dot_dimension_numbers<[1], [0], [0], [1], [0, 0, 1, 1], [], []>} : vector<8x32xf32>, vector<32x128xf32>, vector<8x128xf32> -> vector<8x128xf32>
    %77 = arith.addf %75, %76 : vector<8x128xf32>
    %78 = vector.extract_strided_slice %77 {offsets = [0, 0], sizes = [8, 96], strides = [1, 1]} : vector<8x128xf32> to vector<8x96xf32>
    %79 = arith.negf %78 : vector<8x96xf32>
    %80 = math.exp %79 : vector<8x96xf32>
    %cst_28 = arith.constant 1.000000e+00 : f32
    %81 = vector.broadcast %cst_28 : f32 to vector<8x96xf32>
    %82 = arith.addf %81, %80 : vector<8x96xf32>
    %83 = arith.divf %81, %82 : vector<8x96xf32>
    %84 = vector.extract_strided_slice %77 {offsets = [0, 96], sizes = [8, 32], strides = [1, 1]} : vector<8x128xf32> to vector<8x32xf32>
    %85 = math.tanh %84 : vector<8x32xf32>
    %86 = vector.extract_strided_slice %83 {offsets = [0, 0], sizes = [8, 32], strides = [1, 1]} : vector<8x96xf32> to vector<8x32xf32>
    %87 = vector.extract_strided_slice %83 {offsets = [0, 32], sizes = [8, 32], strides = [1, 1]} : vector<8x96xf32> to vector<8x32xf32>
    %88 = vector.extract_strided_slice %83 {offsets = [0, 64], sizes = [8, 32], strides = [1, 1]} : vector<8x96xf32> to vector<8x32xf32>
    %89 = arith.mulf %87, %71 : vector<8x32xf32>
    %90 = arith.mulf %86, %85 : vector<8x32xf32>
    %91 = arith.addf %89, %90 : vector<8x32xf32>
    %92 = math.tanh %91 : vector<8x32xf32>
    %93 = arith.mulf %88, %92 : vector<8x32xf32>
    %c4 = arith.constant 4 : index
    %c0_29 = arith.constant 0 : index
    %c0_30 = arith.constant 0 : index
    %94 = vector.load %arg15[%c4, %c0_29, %c0_30] : memref<8x8x128xf32, #tpu.memory_space<vmem>>, vector<1x8x128xf32>
    %95 = vector.shape_cast %94 : vector<1x8x128xf32> to vector<8x128xf32>
    %cst_31 = arith.constant dense<0.000000e+00> : vector<8x128xf32>
    %96 = tpu.matmul %93, %11, %cst_31 {dimension_numbers = #tpu.dot_dimension_numbers<[1], [0], [0], [1], [0, 0, 1, 1], [], []>} : vector<8x32xf32>, vector<32x128xf32>, vector<8x128xf32> -> vector<8x128xf32>
    %97 = arith.addf %95, %96 : vector<8x128xf32>
    %98 = vector.extract_strided_slice %97 {offsets = [0, 0], sizes = [8, 96], strides = [1, 1]} : vector<8x128xf32> to vector<8x96xf32>
    %99 = arith.negf %98 : vector<8x96xf32>
    %100 = math.exp %99 : vector<8x96xf32>
    %cst_32 = arith.constant 1.000000e+00 : f32
    %101 = vector.broadcast %cst_32 : f32 to vector<8x96xf32>
    %102 = arith.addf %101, %100 : vector<8x96xf32>
    %103 = arith.divf %101, %102 : vector<8x96xf32>
    %104 = vector.extract_strided_slice %97 {offsets = [0, 96], sizes = [8, 32], strides = [1, 1]} : vector<8x128xf32> to vector<8x32xf32>
    %105 = math.tanh %104 : vector<8x32xf32>
    %106 = vector.extract_strided_slice %103 {offsets = [0, 0], sizes = [8, 32], strides = [1, 1]} : vector<8x96xf32> to vector<8x32xf32>
    %107 = vector.extract_strided_slice %103 {offsets = [0, 32], sizes = [8, 32], strides = [1, 1]} : vector<8x96xf32> to vector<8x32xf32>
    %108 = vector.extract_strided_slice %103 {offsets = [0, 64], sizes = [8, 32], strides = [1, 1]} : vector<8x96xf32> to vector<8x32xf32>
    %109 = arith.mulf %107, %91 : vector<8x32xf32>
    %110 = arith.mulf %106, %105 : vector<8x32xf32>
    %111 = arith.addf %109, %110 : vector<8x32xf32>
    %112 = math.tanh %111 : vector<8x32xf32>
    %113 = arith.mulf %108, %112 : vector<8x32xf32>
    %c5 = arith.constant 5 : index
    %c0_33 = arith.constant 0 : index
    %c0_34 = arith.constant 0 : index
    %114 = vector.load %arg15[%c5, %c0_33, %c0_34] : memref<8x8x128xf32, #tpu.memory_space<vmem>>, vector<1x8x128xf32>
    %115 = vector.shape_cast %114 : vector<1x8x128xf32> to vector<8x128xf32>
    %cst_35 = arith.constant dense<0.000000e+00> : vector<8x128xf32>
    %116 = tpu.matmul %113, %11, %cst_35 {dimension_numbers = #tpu.dot_dimension_numbers<[1], [0], [0], [1], [0, 0, 1, 1], [], []>} : vector<8x32xf32>, vector<32x128xf32>, vector<8x128xf32> -> vector<8x128xf32>
    %117 = arith.addf %115, %116 : vector<8x128xf32>
    %118 = vector.extract_strided_slice %117 {offsets = [0, 0], sizes = [8, 96], strides = [1, 1]} : vector<8x128xf32> to vector<8x96xf32>
    %119 = arith.negf %118 : vector<8x96xf32>
    %120 = math.exp %119 : vector<8x96xf32>
    %cst_36 = arith.constant 1.000000e+00 : f32
    %121 = vector.broadcast %cst_36 : f32 to vector<8x96xf32>
    %122 = arith.addf %121, %120 : vector<8x96xf32>
    %123 = arith.divf %121, %122 : vector<8x96xf32>
    %124 = vector.extract_strided_slice %117 {offsets = [0, 96], sizes = [8, 32], strides = [1, 1]} : vector<8x128xf32> to vector<8x32xf32>
    %125 = math.tanh %124 : vector<8x32xf32>
    %126 = vector.extract_strided_slice %123 {offsets = [0, 0], sizes = [8, 32], strides = [1, 1]} : vector<8x96xf32> to vector<8x32xf32>
    %127 = vector.extract_strided_slice %123 {offsets = [0, 32], sizes = [8, 32], strides = [1, 1]} : vector<8x96xf32> to vector<8x32xf32>
    %128 = vector.extract_strided_slice %123 {offsets = [0, 64], sizes = [8, 32], strides = [1, 1]} : vector<8x96xf32> to vector<8x32xf32>
    %129 = arith.mulf %127, %111 : vector<8x32xf32>
    %130 = arith.mulf %126, %125 : vector<8x32xf32>
    %131 = arith.addf %129, %130 : vector<8x32xf32>
    %132 = math.tanh %131 : vector<8x32xf32>
    %133 = arith.mulf %128, %132 : vector<8x32xf32>
    %c6 = arith.constant 6 : index
    %c0_37 = arith.constant 0 : index
    %c0_38 = arith.constant 0 : index
    %134 = vector.load %arg15[%c6, %c0_37, %c0_38] : memref<8x8x128xf32, #tpu.memory_space<vmem>>, vector<1x8x128xf32>
    %135 = vector.shape_cast %134 : vector<1x8x128xf32> to vector<8x128xf32>
    %cst_39 = arith.constant dense<0.000000e+00> : vector<8x128xf32>
    %136 = tpu.matmul %133, %11, %cst_39 {dimension_numbers = #tpu.dot_dimension_numbers<[1], [0], [0], [1], [0, 0, 1, 1], [], []>} : vector<8x32xf32>, vector<32x128xf32>, vector<8x128xf32> -> vector<8x128xf32>
    %137 = arith.addf %135, %136 : vector<8x128xf32>
    %138 = vector.extract_strided_slice %137 {offsets = [0, 0], sizes = [8, 96], strides = [1, 1]} : vector<8x128xf32> to vector<8x96xf32>
    %139 = arith.negf %138 : vector<8x96xf32>
    %140 = math.exp %139 : vector<8x96xf32>
    %cst_40 = arith.constant 1.000000e+00 : f32
    %141 = vector.broadcast %cst_40 : f32 to vector<8x96xf32>
    %142 = arith.addf %141, %140 : vector<8x96xf32>
    %143 = arith.divf %141, %142 : vector<8x96xf32>
    %144 = vector.extract_strided_slice %137 {offsets = [0, 96], sizes = [8, 32], strides = [1, 1]} : vector<8x128xf32> to vector<8x32xf32>
    %145 = math.tanh %144 : vector<8x32xf32>
    %146 = vector.extract_strided_slice %143 {offsets = [0, 0], sizes = [8, 32], strides = [1, 1]} : vector<8x96xf32> to vector<8x32xf32>
    %147 = vector.extract_strided_slice %143 {offsets = [0, 32], sizes = [8, 32], strides = [1, 1]} : vector<8x96xf32> to vector<8x32xf32>
    %148 = vector.extract_strided_slice %143 {offsets = [0, 64], sizes = [8, 32], strides = [1, 1]} : vector<8x96xf32> to vector<8x32xf32>
    %149 = arith.mulf %147, %131 : vector<8x32xf32>
    %150 = arith.mulf %146, %145 : vector<8x32xf32>
    %151 = arith.addf %149, %150 : vector<8x32xf32>
    %152 = math.tanh %151 : vector<8x32xf32>
    %153 = arith.mulf %148, %152 : vector<8x32xf32>
    %c7 = arith.constant 7 : index
    %c0_41 = arith.constant 0 : index
    %c0_42 = arith.constant 0 : index
    %154 = vector.load %arg15[%c7, %c0_41, %c0_42] : memref<8x8x128xf32, #tpu.memory_space<vmem>>, vector<1x8x128xf32>
    %155 = vector.shape_cast %154 : vector<1x8x128xf32> to vector<8x128xf32>
    %cst_43 = arith.constant dense<0.000000e+00> : vector<8x128xf32>
    %156 = tpu.matmul %153, %11, %cst_43 {dimension_numbers = #tpu.dot_dimension_numbers<[1], [0], [0], [1], [0, 0, 1, 1], [], []>} : vector<8x32xf32>, vector<32x128xf32>, vector<8x128xf32> -> vector<8x128xf32>
    %157 = arith.addf %155, %156 : vector<8x128xf32>
    %158 = vector.extract_strided_slice %157 {offsets = [0, 0], sizes = [8, 96], strides = [1, 1]} : vector<8x128xf32> to vector<8x96xf32>
    %159 = arith.negf %158 : vector<8x96xf32>
    %160 = math.exp %159 : vector<8x96xf32>
    %cst_44 = arith.constant 1.000000e+00 : f32
    %161 = vector.broadcast %cst_44 : f32 to vector<8x96xf32>
    %162 = arith.addf %161, %160 : vector<8x96xf32>
    %163 = arith.divf %161, %162 : vector<8x96xf32>
    %164 = vector.extract_strided_slice %157 {offsets = [0, 96], sizes = [8, 32], strides = [1, 1]} : vector<8x128xf32> to vector<8x32xf32>
    %165 = math.tanh %164 : vector<8x32xf32>
    %166 = vector.extract_strided_slice %163 {offsets = [0, 0], sizes = [8, 32], strides = [1, 1]} : vector<8x96xf32> to vector<8x32xf32>
    %167 = vector.extract_strided_slice %163 {offsets = [0, 32], sizes = [8, 32], strides = [1, 1]} : vector<8x96xf32> to vector<8x32xf32>
    %168 = vector.extract_strided_slice %163 {offsets = [0, 64], sizes = [8, 32], strides = [1, 1]} : vector<8x96xf32> to vector<8x32xf32>
    %169 = arith.mulf %167, %151 : vector<8x32xf32>
    %170 = arith.mulf %166, %165 : vector<8x32xf32>
    %171 = arith.addf %169, %170 : vector<8x32xf32>
    %172 = math.tanh %171 : vector<8x32xf32>
    %173 = arith.mulf %168, %172 : vector<8x32xf32>
    %c0_45 = arith.constant 0 : index
    %c0_46 = arith.constant 0 : index
    %174 = vector.load %arg5[%c0_45, %c0_46] : memref<32x8xf32, #tpu.memory_space<vmem>>, vector<32x8xf32>
    %cst_47 = arith.constant dense<0.000000e+00> : vector<8x8xf32>
    %175 = tpu.matmul %173, %174, %cst_47 {dimension_numbers = #tpu.dot_dimension_numbers<[1], [0], [0], [1], [0, 0, 1, 1], [], []>} : vector<8x32xf32>, vector<32x8xf32>, vector<8x8xf32> -> vector<8x8xf32>
    %c0_48 = arith.constant 0 : index
    %c0_49 = arith.constant 0 : index
    %176 = vector.load %arg6[%c0_48, %c0_49] : memref<1x8xf32, #tpu.memory_space<vmem>>, vector<1x8xf32>
    %177 = vector.broadcast %176 : vector<1x8xf32> to vector<8x8xf32>
    %178 = arith.addf %175, %177 : vector<8x8xf32>
    %c0_50 = arith.constant 0 : index
    %c0_51 = arith.constant 0 : index
    %179 = vector.load %arg14[%c0_50, %c0_51] : memref<8x8xf32, #tpu.memory_space<vmem>>, vector<8x8xf32>
    tpu.vector_store %arg14[%c0_50, %c0_51], %178 {strides = array<i32>} : memref<8x8xf32, #tpu.memory_space<vmem>>, vector<8x8xf32>,
    %c0_52 = arith.constant 0 : index
    %c0_53 = arith.constant 0 : index
    %180 = vector.load %arg7[%c0_52, %c0_53] : memref<8x32xf32, #tpu.memory_space<vmem>>, vector<8x32xf32>
    %cst_54 = arith.constant dense<0.000000e+00> : vector<8x32xf32>
    %181 = tpu.matmul %178, %180, %cst_54 {dimension_numbers = #tpu.dot_dimension_numbers<[1], [0], [0], [1], [0, 0, 1, 1], [], []>} : vector<8x8xf32>, vector<8x32xf32>, vector<8x32xf32> -> vector<8x32xf32>
    %c0_55 = arith.constant 0 : index
    %c0_56 = arith.constant 0 : index
    %182 = vector.load %arg8[%c0_55, %c0_56] : memref<1x32xf32, #tpu.memory_space<vmem>>, vector<1x32xf32>
    %183 = vector.broadcast %182 : vector<1x32xf32> to vector<8x32xf32>
    %184 = arith.addf %181, %183 : vector<8x32xf32>
    %cst_57 = arith.constant 0.000000e+00 : f32
    %185 = vector.broadcast %cst_57 : f32 to vector<8x32xf32>
    %c0_58 = arith.constant 0 : index
    %c0_59 = arith.constant 0 : index
    %186 = vector.load %arg9[%c0_58, %c0_59] : memref<32x128xf32, #tpu.memory_space<vmem>>, vector<32x128xf32>
    %c0_60 = arith.constant 0 : index
    %c0_61 = arith.constant 0 : index
    %187 = vector.load %arg10[%c0_60, %c0_61] : memref<1x128xf32, #tpu.memory_space<vmem>>, vector<1x128xf32>
    %188 = vector.shape_cast %187 : vector<1x128xf32> to vector<1x128xf32>
    %189 = vector.broadcast %188 : vector<1x128xf32> to vector<8x128xf32>
    %cst_62 = arith.constant dense<0.000000e+00> : vector<8x128xf32>
    %190 = tpu.matmul %184, %186, %cst_62 {dimension_numbers = #tpu.dot_dimension_numbers<[1], [0], [0], [1], [0, 0, 1, 1], [], []>} : vector<8x32xf32>, vector<32x128xf32>, vector<8x128xf32> -> vector<8x128xf32>
    %191 = arith.addf %190, %189 : vector<8x128xf32>
    %192 = vector.extract_strided_slice %191 {offsets = [0, 0], sizes = [8, 96], strides = [1, 1]} : vector<8x128xf32> to vector<8x96xf32>
    %193 = arith.negf %192 : vector<8x96xf32>
    %194 = math.exp %193 : vector<8x96xf32>
    %cst_63 = arith.constant 1.000000e+00 : f32
    %195 = vector.broadcast %cst_63 : f32 to vector<8x96xf32>
    %196 = arith.addf %195, %194 : vector<8x96xf32>
    %197 = arith.divf %195, %196 : vector<8x96xf32>
    %198 = vector.extract_strided_slice %191 {offsets = [0, 96], sizes = [8, 32], strides = [1, 1]} : vector<8x128xf32> to vector<8x32xf32>
    %199 = math.tanh %198 : vector<8x32xf32>
    %200 = vector.extract_strided_slice %197 {offsets = [0, 0], sizes = [8, 32], strides = [1, 1]} : vector<8x96xf32> to vector<8x32xf32>
    %201 = vector.extract_strided_slice %197 {offsets = [0, 32], sizes = [8, 32], strides = [1, 1]} : vector<8x96xf32> to vector<8x32xf32>
    %202 = vector.extract_strided_slice %197 {offsets = [0, 64], sizes = [8, 32], strides = [1, 1]} : vector<8x96xf32> to vector<8x32xf32>
    %203 = arith.mulf %201, %185 : vector<8x32xf32>
    %204 = arith.mulf %200, %199 : vector<8x32xf32>
    %205 = arith.addf %203, %204 : vector<8x32xf32>
    %206 = math.tanh %205 : vector<8x32xf32>
    %207 = arith.mulf %202, %206 : vector<8x32xf32>
    %c0_64 = arith.constant 0 : index
    %c0_65 = arith.constant 0 : index
    %c0_66 = arith.constant 0 : index
    %208 = vector.load %arg16[%c0_64, %c0_65, %c0_66] : memref<8x8x32xf32, #tpu.memory_space<vmem>>, vector<1x8x32xf32>
    %209 = vector.shape_cast %208 : vector<1x8x32xf32> to vector<8x32xf32>
    %210 = vector.shape_cast %207 : vector<8x32xf32> to vector<1x8x32xf32>
    tpu.vector_store %arg16[%c0_64, %c0_65, %c0_66], %210 {strides = array<i32>} : memref<8x8x32xf32, #tpu.memory_space<vmem>>, vector<1x8x32xf32>,
    %cst_67 = arith.constant dense<0.000000e+00> : vector<8x128xf32>
    %211 = tpu.matmul %207, %186, %cst_67 {dimension_numbers = #tpu.dot_dimension_numbers<[1], [0], [0], [1], [0, 0, 1, 1], [], []>} : vector<8x32xf32>, vector<32x128xf32>, vector<8x128xf32> -> vector<8x128xf32>
    %212 = arith.addf %211, %189 : vector<8x128xf32>
    %213 = vector.extract_strided_slice %212 {offsets = [0, 0], sizes = [8, 96], strides = [1, 1]} : vector<8x128xf32> to vector<8x96xf32>
    %214 = arith.negf %213 : vector<8x96xf32>
    %215 = math.exp %214 : vector<8x96xf32>
    %cst_68 = arith.constant 1.000000e+00 : f32
    %216 = vector.broadcast %cst_68 : f32 to vector<8x96xf32>
    %217 = arith.addf %216, %215 : vector<8x96xf32>
    %218 = arith.divf %216, %217 : vector<8x96xf32>
    %219 = vector.extract_strided_slice %212 {offsets = [0, 96], sizes = [8, 32], strides = [1, 1]} : vector<8x128xf32> to vector<8x32xf32>
    %220 = math.tanh %219 : vector<8x32xf32>
    %221 = vector.extract_strided_slice %218 {offsets = [0, 0], sizes = [8, 32], strides = [1, 1]} : vector<8x96xf32> to vector<8x32xf32>
    %222 = vector.extract_strided_slice %218 {offsets = [0, 32], sizes = [8, 32], strides = [1, 1]} : vector<8x96xf32> to vector<8x32xf32>
    %223 = vector.extract_strided_slice %218 {offsets = [0, 64], sizes = [8, 32], strides = [1, 1]} : vector<8x96xf32> to vector<8x32xf32>
    %224 = arith.mulf %222, %205 : vector<8x32xf32>
    %225 = arith.mulf %221, %220 : vector<8x32xf32>
    %226 = arith.addf %224, %225 : vector<8x32xf32>
    %227 = math.tanh %226 : vector<8x32xf32>
    %228 = arith.mulf %223, %227 : vector<8x32xf32>
    %c1_69 = arith.constant 1 : index
    %c0_70 = arith.constant 0 : index
    %c0_71 = arith.constant 0 : index
    %229 = vector.load %arg16[%c1_69, %c0_70, %c0_71] : memref<8x8x32xf32, #tpu.memory_space<vmem>>, vector<1x8x32xf32>
    %230 = vector.shape_cast %229 : vector<1x8x32xf32> to vector<8x32xf32>
    %231 = vector.shape_cast %228 : vector<8x32xf32> to vector<1x8x32xf32>
    tpu.vector_store %arg16[%c1_69, %c0_70, %c0_71], %231 {strides = array<i32>} : memref<8x8x32xf32, #tpu.memory_space<vmem>>, vector<1x8x32xf32>,
    %cst_72 = arith.constant dense<0.000000e+00> : vector<8x128xf32>
    %232 = tpu.matmul %228, %186, %cst_72 {dimension_numbers = #tpu.dot_dimension_numbers<[1], [0], [0], [1], [0, 0, 1, 1], [], []>} : vector<8x32xf32>, vector<32x128xf32>, vector<8x128xf32> -> vector<8x128xf32>
    %233 = arith.addf %232, %189 : vector<8x128xf32>
    %234 = vector.extract_strided_slice %233 {offsets = [0, 0], sizes = [8, 96], strides = [1, 1]} : vector<8x128xf32> to vector<8x96xf32>
    %235 = arith.negf %234 : vector<8x96xf32>
    %236 = math.exp %235 : vector<8x96xf32>
    %cst_73 = arith.constant 1.000000e+00 : f32
    %237 = vector.broadcast %cst_73 : f32 to vector<8x96xf32>
    %238 = arith.addf %237, %236 : vector<8x96xf32>
    %239 = arith.divf %237, %238 : vector<8x96xf32>
    %240 = vector.extract_strided_slice %233 {offsets = [0, 96], sizes = [8, 32], strides = [1, 1]} : vector<8x128xf32> to vector<8x32xf32>
    %241 = math.tanh %240 : vector<8x32xf32>
    %242 = vector.extract_strided_slice %239 {offsets = [0, 0], sizes = [8, 32], strides = [1, 1]} : vector<8x96xf32> to vector<8x32xf32>
    %243 = vector.extract_strided_slice %239 {offsets = [0, 32], sizes = [8, 32], strides = [1, 1]} : vector<8x96xf32> to vector<8x32xf32>
    %244 = vector.extract_strided_slice %239 {offsets = [0, 64], sizes = [8, 32], strides = [1, 1]} : vector<8x96xf32> to vector<8x32xf32>
    %245 = arith.mulf %243, %226 : vector<8x32xf32>
    %246 = arith.mulf %242, %241 : vector<8x32xf32>
    %247 = arith.addf %245, %246 : vector<8x32xf32>
    %248 = math.tanh %247 : vector<8x32xf32>
    %249 = arith.mulf %244, %248 : vector<8x32xf32>
    %c2_74 = arith.constant 2 : index
    %c0_75 = arith.constant 0 : index
    %c0_76 = arith.constant 0 : index
    %250 = vector.load %arg16[%c2_74, %c0_75, %c0_76] : memref<8x8x32xf32, #tpu.memory_space<vmem>>, vector<1x8x32xf32>
    %251 = vector.shape_cast %250 : vector<1x8x32xf32> to vector<8x32xf32>
    %252 = vector.shape_cast %249 : vector<8x32xf32> to vector<1x8x32xf32>
    tpu.vector_store %arg16[%c2_74, %c0_75, %c0_76], %252 {strides = array<i32>} : memref<8x8x32xf32, #tpu.memory_space<vmem>>, vector<1x8x32xf32>,
    %cst_77 = arith.constant dense<0.000000e+00> : vector<8x128xf32>
    %253 = tpu.matmul %249, %186, %cst_77 {dimension_numbers = #tpu.dot_dimension_numbers<[1], [0], [0], [1], [0, 0, 1, 1], [], []>} : vector<8x32xf32>, vector<32x128xf32>, vector<8x128xf32> -> vector<8x128xf32>
    %254 = arith.addf %253, %189 : vector<8x128xf32>
    %255 = vector.extract_strided_slice %254 {offsets = [0, 0], sizes = [8, 96], strides = [1, 1]} : vector<8x128xf32> to vector<8x96xf32>
    %256 = arith.negf %255 : vector<8x96xf32>
    %257 = math.exp %256 : vector<8x96xf32>
    %cst_78 = arith.constant 1.000000e+00 : f32
    %258 = vector.broadcast %cst_78 : f32 to vector<8x96xf32>
    %259 = arith.addf %258, %257 : vector<8x96xf32>
    %260 = arith.divf %258, %259 : vector<8x96xf32>
    %261 = vector.extract_strided_slice %254 {offsets = [0, 96], sizes = [8, 32], strides = [1, 1]} : vector<8x128xf32> to vector<8x32xf32>
    %262 = math.tanh %261 : vector<8x32xf32>
    %263 = vector.extract_strided_slice %260 {offsets = [0, 0], sizes = [8, 32], strides = [1, 1]} : vector<8x96xf32> to vector<8x32xf32>
    %264 = vector.extract_strided_slice %260 {offsets = [0, 32], sizes = [8, 32], strides = [1, 1]} : vector<8x96xf32> to vector<8x32xf32>
    %265 = vector.extract_strided_slice %260 {offsets = [0, 64], sizes = [8, 32], strides = [1, 1]} : vector<8x96xf32> to vector<8x32xf32>
    %266 = arith.mulf %264, %247 : vector<8x32xf32>
    %267 = arith.mulf %263, %262 : vector<8x32xf32>
    %268 = arith.addf %266, %267 : vector<8x32xf32>
    %269 = math.tanh %268 : vector<8x32xf32>
    %270 = arith.mulf %265, %269 : vector<8x32xf32>
    %c3_79 = arith.constant 3 : index
    %c0_80 = arith.constant 0 : index
    %c0_81 = arith.constant 0 : index
    %271 = vector.load %arg16[%c3_79, %c0_80, %c0_81] : memref<8x8x32xf32, #tpu.memory_space<vmem>>, vector<1x8x32xf32>
    %272 = vector.shape_cast %271 : vector<1x8x32xf32> to vector<8x32xf32>
    %273 = vector.shape_cast %270 : vector<8x32xf32> to vector<1x8x32xf32>
    tpu.vector_store %arg16[%c3_79, %c0_80, %c0_81], %273 {strides = array<i32>} : memref<8x8x32xf32, #tpu.memory_space<vmem>>, vector<1x8x32xf32>,
    %cst_82 = arith.constant dense<0.000000e+00> : vector<8x128xf32>
    %274 = tpu.matmul %270, %186, %cst_82 {dimension_numbers = #tpu.dot_dimension_numbers<[1], [0], [0], [1], [0, 0, 1, 1], [], []>} : vector<8x32xf32>, vector<32x128xf32>, vector<8x128xf32> -> vector<8x128xf32>
    %275 = arith.addf %274, %189 : vector<8x128xf32>
    %276 = vector.extract_strided_slice %275 {offsets = [0, 0], sizes = [8, 96], strides = [1, 1]} : vector<8x128xf32> to vector<8x96xf32>
    %277 = arith.negf %276 : vector<8x96xf32>
    %278 = math.exp %277 : vector<8x96xf32>
    %cst_83 = arith.constant 1.000000e+00 : f32
    %279 = vector.broadcast %cst_83 : f32 to vector<8x96xf32>
    %280 = arith.addf %279, %278 : vector<8x96xf32>
    %281 = arith.divf %279, %280 : vector<8x96xf32>
    %282 = vector.extract_strided_slice %275 {offsets = [0, 96], sizes = [8, 32], strides = [1, 1]} : vector<8x128xf32> to vector<8x32xf32>
    %283 = math.tanh %282 : vector<8x32xf32>
    %284 = vector.extract_strided_slice %281 {offsets = [0, 0], sizes = [8, 32], strides = [1, 1]} : vector<8x96xf32> to vector<8x32xf32>
    %285 = vector.extract_strided_slice %281 {offsets = [0, 32], sizes = [8, 32], strides = [1, 1]} : vector<8x96xf32> to vector<8x32xf32>
    %286 = vector.extract_strided_slice %281 {offsets = [0, 64], sizes = [8, 32], strides = [1, 1]} : vector<8x96xf32> to vector<8x32xf32>
    %287 = arith.mulf %285, %268 : vector<8x32xf32>
    %288 = arith.mulf %284, %283 : vector<8x32xf32>
    %289 = arith.addf %287, %288 : vector<8x32xf32>
    %290 = math.tanh %289 : vector<8x32xf32>
    %291 = arith.mulf %286, %290 : vector<8x32xf32>
    %c4_84 = arith.constant 4 : index
    %c0_85 = arith.constant 0 : index
    %c0_86 = arith.constant 0 : index
    %292 = vector.load %arg16[%c4_84, %c0_85, %c0_86] : memref<8x8x32xf32, #tpu.memory_space<vmem>>, vector<1x8x32xf32>
    %293 = vector.shape_cast %292 : vector<1x8x32xf32> to vector<8x32xf32>
    %294 = vector.shape_cast %291 : vector<8x32xf32> to vector<1x8x32xf32>
    tpu.vector_store %arg16[%c4_84, %c0_85, %c0_86], %294 {strides = array<i32>} : memref<8x8x32xf32, #tpu.memory_space<vmem>>, vector<1x8x32xf32>,
    %cst_87 = arith.constant dense<0.000000e+00> : vector<8x128xf32>
    %295 = tpu.matmul %291, %186, %cst_87 {dimension_numbers = #tpu.dot_dimension_numbers<[1], [0], [0], [1], [0, 0, 1, 1], [], []>} : vector<8x32xf32>, vector<32x128xf32>, vector<8x128xf32> -> vector<8x128xf32>
    %296 = arith.addf %295, %189 : vector<8x128xf32>
    %297 = vector.extract_strided_slice %296 {offsets = [0, 0], sizes = [8, 96], strides = [1, 1]} : vector<8x128xf32> to vector<8x96xf32>
    %298 = arith.negf %297 : vector<8x96xf32>
    %299 = math.exp %298 : vector<8x96xf32>
    %cst_88 = arith.constant 1.000000e+00 : f32
    %300 = vector.broadcast %cst_88 : f32 to vector<8x96xf32>
    %301 = arith.addf %300, %299 : vector<8x96xf32>
    %302 = arith.divf %300, %301 : vector<8x96xf32>
    %303 = vector.extract_strided_slice %296 {offsets = [0, 96], sizes = [8, 32], strides = [1, 1]} : vector<8x128xf32> to vector<8x32xf32>
    %304 = math.tanh %303 : vector<8x32xf32>
    %305 = vector.extract_strided_slice %302 {offsets = [0, 0], sizes = [8, 32], strides = [1, 1]} : vector<8x96xf32> to vector<8x32xf32>
    %306 = vector.extract_strided_slice %302 {offsets = [0, 32], sizes = [8, 32], strides = [1, 1]} : vector<8x96xf32> to vector<8x32xf32>
    %307 = vector.extract_strided_slice %302 {offsets = [0, 64], sizes = [8, 32], strides = [1, 1]} : vector<8x96xf32> to vector<8x32xf32>
    %308 = arith.mulf %306, %289 : vector<8x32xf32>
    %309 = arith.mulf %305, %304 : vector<8x32xf32>
    %310 = arith.addf %308, %309 : vector<8x32xf32>
    %311 = math.tanh %310 : vector<8x32xf32>
    %312 = arith.mulf %307, %311 : vector<8x32xf32>
    %c5_89 = arith.constant 5 : index
    %c0_90 = arith.constant 0 : index
    %c0_91 = arith.constant 0 : index
    %313 = vector.load %arg16[%c5_89, %c0_90, %c0_91] : memref<8x8x32xf32, #tpu.memory_space<vmem>>, vector<1x8x32xf32>
    %314 = vector.shape_cast %313 : vector<1x8x32xf32> to vector<8x32xf32>
    %315 = vector.shape_cast %312 : vector<8x32xf32> to vector<1x8x32xf32>
    tpu.vector_store %arg16[%c5_89, %c0_90, %c0_91], %315 {strides = array<i32>} : memref<8x8x32xf32, #tpu.memory_space<vmem>>, vector<1x8x32xf32>,
    %cst_92 = arith.constant dense<0.000000e+00> : vector<8x128xf32>
    %316 = tpu.matmul %312, %186, %cst_92 {dimension_numbers = #tpu.dot_dimension_numbers<[1], [0], [0], [1], [0, 0, 1, 1], [], []>} : vector<8x32xf32>, vector<32x128xf32>, vector<8x128xf32> -> vector<8x128xf32>
    %317 = arith.addf %316, %189 : vector<8x128xf32>
    %318 = vector.extract_strided_slice %317 {offsets = [0, 0], sizes = [8, 96], strides = [1, 1]} : vector<8x128xf32> to vector<8x96xf32>
    %319 = arith.negf %318 : vector<8x96xf32>
    %320 = math.exp %319 : vector<8x96xf32>
    %cst_93 = arith.constant 1.000000e+00 : f32
    %321 = vector.broadcast %cst_93 : f32 to vector<8x96xf32>
    %322 = arith.addf %321, %320 : vector<8x96xf32>
    %323 = arith.divf %321, %322 : vector<8x96xf32>
    %324 = vector.extract_strided_slice %317 {offsets = [0, 96], sizes = [8, 32], strides = [1, 1]} : vector<8x128xf32> to vector<8x32xf32>
    %325 = math.tanh %324 : vector<8x32xf32>
    %326 = vector.extract_strided_slice %323 {offsets = [0, 0], sizes = [8, 32], strides = [1, 1]} : vector<8x96xf32> to vector<8x32xf32>
    %327 = vector.extract_strided_slice %323 {offsets = [0, 32], sizes = [8, 32], strides = [1, 1]} : vector<8x96xf32> to vector<8x32xf32>
    %328 = vector.extract_strided_slice %323 {offsets = [0, 64], sizes = [8, 32], strides = [1, 1]} : vector<8x96xf32> to vector<8x32xf32>
    %329 = arith.mulf %327, %310 : vector<8x32xf32>
    %330 = arith.mulf %326, %325 : vector<8x32xf32>
    %331 = arith.addf %329, %330 : vector<8x32xf32>
    %332 = math.tanh %331 : vector<8x32xf32>
    %333 = arith.mulf %328, %332 : vector<8x32xf32>
    %c6_94 = arith.constant 6 : index
    %c0_95 = arith.constant 0 : index
    %c0_96 = arith.constant 0 : index
    %334 = vector.load %arg16[%c6_94, %c0_95, %c0_96] : memref<8x8x32xf32, #tpu.memory_space<vmem>>, vector<1x8x32xf32>
    %335 = vector.shape_cast %334 : vector<1x8x32xf32> to vector<8x32xf32>
    %336 = vector.shape_cast %333 : vector<8x32xf32> to vector<1x8x32xf32>
    tpu.vector_store %arg16[%c6_94, %c0_95, %c0_96], %336 {strides = array<i32>} : memref<8x8x32xf32, #tpu.memory_space<vmem>>, vector<1x8x32xf32>,
    %cst_97 = arith.constant dense<0.000000e+00> : vector<8x128xf32>
    %337 = tpu.matmul %333, %186, %cst_97 {dimension_numbers = #tpu.dot_dimension_numbers<[1], [0], [0], [1], [0, 0, 1, 1], [], []>} : vector<8x32xf32>, vector<32x128xf32>, vector<8x128xf32> -> vector<8x128xf32>
    %338 = arith.addf %337, %189 : vector<8x128xf32>
    %339 = vector.extract_strided_slice %338 {offsets = [0, 0], sizes = [8, 96], strides = [1, 1]} : vector<8x128xf32> to vector<8x96xf32>
    %340 = arith.negf %339 : vector<8x96xf32>
    %341 = math.exp %340 : vector<8x96xf32>
    %cst_98 = arith.constant 1.000000e+00 : f32
    %342 = vector.broadcast %cst_98 : f32 to vector<8x96xf32>
    %343 = arith.addf %342, %341 : vector<8x96xf32>
    %344 = arith.divf %342, %343 : vector<8x96xf32>
    %345 = vector.extract_strided_slice %338 {offsets = [0, 96], sizes = [8, 32], strides = [1, 1]} : vector<8x128xf32> to vector<8x32xf32>
    %346 = math.tanh %345 : vector<8x32xf32>
    %347 = vector.extract_strided_slice %344 {offsets = [0, 0], sizes = [8, 32], strides = [1, 1]} : vector<8x96xf32> to vector<8x32xf32>
    %348 = vector.extract_strided_slice %344 {offsets = [0, 32], sizes = [8, 32], strides = [1, 1]} : vector<8x96xf32> to vector<8x32xf32>
    %349 = vector.extract_strided_slice %344 {offsets = [0, 64], sizes = [8, 32], strides = [1, 1]} : vector<8x96xf32> to vector<8x32xf32>
    %350 = arith.mulf %348, %331 : vector<8x32xf32>
    %351 = arith.mulf %347, %346 : vector<8x32xf32>
    %352 = arith.addf %350, %351 : vector<8x32xf32>
    %353 = math.tanh %352 : vector<8x32xf32>
    %354 = arith.mulf %349, %353 : vector<8x32xf32>
    %c7_99 = arith.constant 7 : index
    %c0_100 = arith.constant 0 : index
    %c0_101 = arith.constant 0 : index
    %355 = vector.load %arg16[%c7_99, %c0_100, %c0_101] : memref<8x8x32xf32, #tpu.memory_space<vmem>>, vector<1x8x32xf32>
    %356 = vector.shape_cast %355 : vector<1x8x32xf32> to vector<8x32xf32>
    %357 = vector.shape_cast %354 : vector<8x32xf32> to vector<1x8x32xf32>
    tpu.vector_store %arg16[%c7_99, %c0_100, %c0_101], %357 {strides = array<i32>} : memref<8x8x32xf32, #tpu.memory_space<vmem>>, vector<1x8x32xf32>,
    %c0_102 = arith.constant 0 : index
    %c0_103 = arith.constant 0 : index
    %358 = vector.load %arg11[%c0_102, %c0_103] : memref<1x32xf32, #tpu.memory_space<vmem>>, vector<1x32xf32>
    %359 = vector.shape_cast %358 : vector<1x32xf32> to vector<1x1x32xf32>
    %c0_104 = arith.constant 0 : index
    %c0_105 = arith.constant 0 : index
    %c0_106 = arith.constant 0 : index
    %360 = vector.load %arg16[%c0_104, %c0_105, %c0_106] : memref<8x8x32xf32, #tpu.memory_space<vmem>>, vector<8x8x32xf32>
    %361 = vector.broadcast %359 : vector<1x1x32xf32> to vector<8x8x32xf32>
    %362 = arith.mulf %360, %361 : vector<8x8x32xf32>
    %cst_107 = arith.constant dense<0.000000e+00> : vector<8x8xf32>
    %363 = vector.multi_reduction <add>, %362, %cst_107 [2] : vector<8x8x32xf32> to vector<8x8xf32>
    %364 = vector.shape_cast %363 : vector<8x8xf32> to vector<8x8x1xf32>
    %c0_108 = arith.constant 0 : index
    %c0_109 = arith.constant 0 : index
    %365 = vector.load %arg12[%c0_108, %c0_109] : memref<1x1xf32, #tpu.memory_space<vmem>>, vector<1x1xf32>
    %366 = vector.shape_cast %365 : vector<1x1xf32> to vector<1x1x1xf32>
    %367 = vector.broadcast %366 : vector<1x1x1xf32> to vector<8x8x1xf32>
    %368 = arith.addf %364, %367 : vector<8x8x1xf32>
    %c0_110 = arith.constant 0 : index
    %c0_111 = arith.constant 0 : index
    %c0_112 = arith.constant 0 : index
    %369 = vector.load %arg13[%c0_110, %c0_111, %c0_112] : memref<8x8x1xf32, #tpu.memory_space<vmem>>, vector<8x8x1xf32>
    tpu.vector_store %arg13[%c0_110, %c0_111, %c0_112], %368 {strides = array<i32>} : memref<8x8x1xf32, #tpu.memory_space<vmem>>, vector<8x8x1xf32>,
    return
  }
  func.func @transform_0(%arg0: i32) -> (i32, i32, i32) {
    %c0_i32 = arith.constant 0 : i32
    %c0_i32_0 = arith.constant 0 : i32
    %c0_i32_1 = arith.constant 0 : i32
    return %c0_i32, %arg0, %c0_i32_0 : i32, i32, i32
  }
  func.func @transform_1(%arg0: i32) -> (i32, i32) {
    %c0_i32 = arith.constant 0 : i32
    %c0_i32_0 = arith.constant 0 : i32
    %c0_i32_1 = arith.constant 0 : i32
    return %c0_i32, %c0_i32_0 : i32, i32
  }
  func.func @transform_2(%arg0: i32) -> (i32, i32) {
    %c0_i32 = arith.constant 0 : i32
    %c0_i32_0 = arith.constant 0 : i32
    %c0_i32_1 = arith.constant 0 : i32
    return %c0_i32, %c0_i32_0 : i32, i32
  }
  func.func @transform_3(%arg0: i32) -> (i32, i32) {
    %c0_i32 = arith.constant 0 : i32
    %c0_i32_0 = arith.constant 0 : i32
    %c0_i32_1 = arith.constant 0 : i32
    return %c0_i32, %c0_i32_0 : i32, i32
  }
  func.func @transform_4(%arg0: i32) -> (i32, i32) {
    %c0_i32 = arith.constant 0 : i32
    %c0_i32_0 = arith.constant 0 : i32
    %c0_i32_1 = arith.constant 0 : i32
    return %c0_i32, %c0_i32_0 : i32, i32
  }
  func.func @transform_5(%arg0: i32) -> (i32, i32) {
    %c0_i32 = arith.constant 0 : i32
    %c0_i32_0 = arith.constant 0 : i32
    %c0_i32_1 = arith.constant 0 : i32
    return %c0_i32, %c0_i32_0 : i32, i32
  }
  func.func @transform_6(%arg0: i32) -> (i32, i32) {
    %c0_i32 = arith.constant 0 : i32
    %c0_i32_0 = arith.constant 0 : i32
    %c0_i32_1 = arith.constant 0 : i32
    return %c0_i32, %c0_i32_0 : i32, i32
  }
  func.func @transform_7(%arg0: i32) -> (i32, i32) {
    %c0_i32 = arith.constant 0 : i32
    %c0_i32_0 = arith.constant 0 : i32
    %c0_i32_1 = arith.constant 0 : i32
    return %c0_i32, %c0_i32_0 : i32, i32
  }
  func.func @transform_8(%arg0: i32) -> (i32, i32) {
    %c0_i32 = arith.constant 0 : i32
    %c0_i32_0 = arith.constant 0 : i32
    %c0_i32_1 = arith.constant 0 : i32
    return %c0_i32, %c0_i32_0 : i32, i32
  }
  func.func @transform_9(%arg0: i32) -> (i32, i32) {
    %c0_i32 = arith.constant 0 : i32
    %c0_i32_0 = arith.constant 0 : i32
    %c0_i32_1 = arith.constant 0 : i32
    return %c0_i32, %c0_i32_0 : i32, i32
  }
  func.func @transform_10(%arg0: i32) -> (i32, i32) {
    %c0_i32 = arith.constant 0 : i32
    %c0_i32_0 = arith.constant 0 : i32
    %c0_i32_1 = arith.constant 0 : i32
    return %c0_i32, %c0_i32_0 : i32, i32
  }
  func.func @transform_11(%arg0: i32) -> (i32, i32) {
    %c0_i32 = arith.constant 0 : i32
    %c0_i32_0 = arith.constant 0 : i32
    %c0_i32_1 = arith.constant 0 : i32
    return %c0_i32, %c0_i32_0 : i32, i32
  }
  func.func @transform_12(%arg0: i32) -> (i32, i32, i32) {
    %c0_i32 = arith.constant 0 : i32
    %c0_i32_0 = arith.constant 0 : i32
    %c0_i32_1 = arith.constant 0 : i32
    return %c0_i32, %arg0, %c0_i32_0 : i32, i32, i32
  }
  func.func @transform_13(%arg0: i32) -> (i32, i32) {
    %c0_i32 = arith.constant 0 : i32
    %c0_i32_0 = arith.constant 0 : i32
    return %arg0, %c0_i32 : i32, i32
  }
}

</mosaic_0001>

<llo_original>
// kernel: tpu_custom_call.1
$region0: #{tpu_custom_call.1}
  #allocation0 [shape = 'u32[]', space=smem, size = 0x4, offset = 0x4, fixed_abs, tag = 'smem constant byte address 0x4 - core index']
  #allocation1 [shape = 'u32[144,128]{1,0:T(1,128)}', space=vmem, size = 0x12000, scoped, tag = 'internal scratch']
  #allocation2 [shape = 'f32[8,8,128]{2,1,0:T(8,128)}', space=vmem, size = 0x8000, scoped, tag = 'scratch operand']
  #allocation3 [shape = 'f32[8,8,32]{2,1,0:T(8,128)}', space=vmem, size = 0x8000, scoped, tag = 'scratch operand']
  #allocation4 [shape = 'f32[1,1]{1,0:T(1,128)S(1)}', space=vmem, size = 0x200, scoped, tag = 'scoped memory for tpu_custom_call.1']
  %s0 = inlined_call_operand.vmem [shape: f32[8,8,1], index: 0, kind: input, shape index: {}]
  %s1 = inlined_call_operand.vmem [shape: f32[1,128], index: 1, kind: input, shape index: {}]
  %s2 = inlined_call_operand.vmem [shape: f32[32,128], index: 2, kind: input, shape index: {}]
  %s3 = inlined_call_operand.vmem [shape: f32[1,128], index: 3, kind: input, shape index: {}]
  %s4 = inlined_call_operand.vmem [shape: f32[32,8], index: 4, kind: input, shape index: {}]
  %s5 = inlined_call_operand.vmem [shape: f32[1,8], index: 5, kind: input, shape index: {}]
  %s6 = inlined_call_operand.vmem [shape: f32[8,32], index: 6, kind: input, shape index: {}]
  %s7 = inlined_call_operand.vmem [shape: f32[1,32], index: 7, kind: input, shape index: {}]
  %s8 = inlined_call_operand.vmem [shape: f32[32,128], index: 8, kind: input, shape index: {}]
  %s9 = inlined_call_operand.vmem [shape: f32[1,128], index: 9, kind: input, shape index: {}]
  %s10 = inlined_call_operand.vmem [shape: f32[1,32], index: 10, kind: input, shape index: {}]
  %s11 = inlined_call_operand.<no memory space> [shape: f32[1,1], index: 11, kind: input, shape index: {}]
  %s12 = inlined_call_operand.vmem [shape: f32[8,8,1], index: 12, kind: output, shape index: {0}]
  %s13 = inlined_call_operand.hbm [shape: f32[8,8], index: 13, kind: output, shape index: {1}]
  %14 = xla_tuple %s12, %s13
  %s15 = sld [smem:[#allocation0]]
  $region66: #{tpu_custom_call.1} parent=0
    _
  %s17 = ssub.s32 1, %s15
  %s18 = scalar_select 0, %s17, %s15
  %v19 = vstv %s11
  %20 = vst [vmem:[#allocation4] sm:$0x1] %v19
  $region1: #{tpu_custom_call.1} parent=0
    #allocation5 [shape = 'u8[4096]{0}', space=vmem, size = 0x1000, scoped, tag = 'output window, operand 1, single buffered']
    #allocation6 [shape = 's32[1]{0}', space=sflag, size = 0x4, scoped, tag = 'scoped memory for tpu_custom_call.1']
    %21 = vsyncpa [#allocation6], 0
    // Predicated region
    $region2: #{tpu_custom_call.1} parent=1 // pred_check
      _
    $region3: #{tpu_custom_call.1} parent=1 // pred_check_branch
      %23 = sbr.rel (0) target = $region5
    $region4: #{tpu_custom_call.1} parent=1 // pred_region
      _
    $region5: #{tpu_custom_call.1} parent=1 // pred_fallthru
      _
    // Predicated region
    $region6: #{tpu_custom_call.1} parent=1 // pred_check
      _
    $region7: #{tpu_custom_call.1} parent=1 // pred_check_branch
      %25 = sbr.rel (0) target = $region9
    $region8: #{tpu_custom_call.1} parent=1 // pred_region
      _
    $region9: #{tpu_custom_call.1} parent=1 // pred_fallthru
      _
    // Predicated region
    $region10: #{tpu_custom_call.1} parent=1 // pred_check
      _
    $region11: #{tpu_custom_call.1} parent=1 // pred_check_branch
      %27 = sbr.rel (0) target = $region13
    $region12: #{tpu_custom_call.1} parent=1 // pred_region
      _
    $region13: #{tpu_custom_call.1} parent=1 // pred_fallthru
      _
    // Predicated region
    $region14: #{tpu_custom_call.1} parent=1 // pred_check
      _
    $region15: #{tpu_custom_call.1} parent=1 // pred_check_branch
      %29 = sbr.rel (0) target = $region17
    $region16: #{tpu_custom_call.1} parent=1 // pred_region
      _
    $region17: #{tpu_custom_call.1} parent=1 // pred_fallthru
      _
    // Predicated region
    $region18: #{tpu_custom_call.1} parent=1 // pred_check
      _
    $region19: #{tpu_custom_call.1} parent=1 // pred_check_branch
      %31 = sbr.rel (0) target = $region21
    $region20: #{tpu_custom_call.1} parent=1 // pred_region
      _
    $region21: #{tpu_custom_call.1} parent=1 // pred_fallthru
      _
    // Predicated region
    $region22: #{tpu_custom_call.1} parent=1 // pred_check
      _
    $region23: #{tpu_custom_call.1} parent=1 // pred_check_branch
      %33 = sbr.rel (0) target = $region25
    $region24: #{tpu_custom_call.1} parent=1 // pred_region
      _
    $region25: #{tpu_custom_call.1} parent=1 // pred_fallthru
      _
    // Predicated region
    $region26: #{tpu_custom_call.1} parent=1 // pred_check
      _
    $region27: #{tpu_custom_call.1} parent=1 // pred_check_branch
      %35 = sbr.rel (0) target = $region29
    $region28: #{tpu_custom_call.1} parent=1 // pred_region
      _
    $region29: #{tpu_custom_call.1} parent=1 // pred_fallthru
      _
    // Predicated region
    $region30: #{tpu_custom_call.1} parent=1 // pred_check
      _
    $region31: #{tpu_custom_call.1} parent=1 // pred_check_branch
      %37 = sbr.rel (0) target = $region33
    $region32: #{tpu_custom_call.1} parent=1 // pred_region
      _
    $region33: #{tpu_custom_call.1} parent=1 // pred_fallthru
      _
    // Predicated region
    $region34: #{tpu_custom_call.1} parent=1 // pred_check
      _
    $region35: #{tpu_custom_call.1} parent=1 // pred_check_branch
      %39 = sbr.rel (0) target = $region37
    $region36: #{tpu_custom_call.1} parent=1 // pred_region
      _
    $region37: #{tpu_custom_call.1} parent=1 // pred_fallthru
      _
    // Predicated region
    $region38: #{tpu_custom_call.1} parent=1 // pred_check
      _
    $region39: #{tpu_custom_call.1} parent=1 // pred_check_branch
      %41 = sbr.rel (0) target = $region41
    $region40: #{tpu_custom_call.1} parent=1 // pred_region
      _
    $region41: #{tpu_custom_call.1} parent=1 // pred_fallthru
      _
    // Predicated region
    $region42: #{tpu_custom_call.1} parent=1 // pred_check
      _
    $region43: #{tpu_custom_call.1} parent=1 // pred_check_branch
      %43 = sbr.rel (0) target = $region45
    $region44: #{tpu_custom_call.1} parent=1 // pred_region
      _
    $region45: #{tpu_custom_call.1} parent=1 // pred_fallthru
      _
    // Predicated region
    $region46: #{tpu_custom_call.1} parent=1 // pred_check
      _
    $region47: #{tpu_custom_call.1} parent=1 // pred_check_branch
      %45 = sbr.rel (0) target = $region49
    $region48: #{tpu_custom_call.1} parent=1 // pred_region
      _
    $region49: #{tpu_custom_call.1} parent=1 // pred_fallthru
      _
    %v46 = vld [vmem:[%s0] sm:$0xff]
    %v47 = vld [vmem:[%s0 + $0x8] sm:$0xff]
    %v48 = vld [vmem:[%s0 + $0x10] sm:$0xff]
    %v49 = vld [vmem:[%s0 + $0x18] sm:$0xff]
    %v50 = vld [vmem:[%s0 + $0x20] sm:$0xff]
    %v51 = vld [vmem:[%s0 + $0x28] sm:$0xff]
    %v52 = vld [vmem:[%s0 + $0x30] sm:$0xff]
    %v53 = vld [vmem:[%s0 + $0x38] sm:$0xff]
    %v54 = vld [vmem:[%s1] sm:$0x1]
    %56 = vset.pattern.permute.xlu0 0
    %57 = vperm.xlu0 %56, %v46
    %v58 = vpop.permute.xlu0 %57
    %61 = vset.pattern.permute.xlu0 0
    %62 = vperm.xlu0 %61, %v47
    %v63 = vpop.permute.xlu0 %62
    %66 = vset.pattern.permute.xlu0 0
    %67 = vperm.xlu0 %66, %v48
    %v68 = vpop.permute.xlu0 %67
    %71 = vset.pattern.permute.xlu0 0
    %72 = vperm.xlu0 %71, %v49
    %v73 = vpop.permute.xlu0 %72
    %76 = vset.pattern.permute.xlu0 0
    %77 = vperm.xlu0 %76, %v50
    %v78 = vpop.permute.xlu0 %77
    %81 = vset.pattern.permute.xlu0 0
    %82 = vperm.xlu0 %81, %v51
    %v83 = vpop.permute.xlu0 %82
    %86 = vset.pattern.permute.xlu0 0
    %87 = vperm.xlu0 %86, %v52
    %v88 = vpop.permute.xlu0 %87
    %91 = vset.pattern.permute.xlu0 0
    %92 = vperm.xlu0 %91, %v53
    %v93 = vpop.permute.xlu0 %92
    %v96 = vlaneseq
    %v97 = vshrl.u32 %v96, 7
    %v98 = vsub.s32 0, %v97
    %v99 = vrot.slane %v54, %v98
    %v101 = vmul.f32 %v58, %v99
    %v102 = vmul.f32 %v63, %v99
    %v103 = vmul.f32 %v68, %v99
    %v104 = vmul.f32 %v73, %v99
    %v105 = vmul.f32 %v78, %v99
    %v106 = vmul.f32 %v83, %v99
    %v107 = vmul.f32 %v88, %v99
    %v108 = vmul.f32 %v93, %v99
    %v109 = vld [vmem:[%s3] sm:$0x1]
    %v111 = vlaneseq
    %v112 = vshrl.u32 %v111, 7
    %v113 = vsub.s32 0, %v112
    %v114 = vrot.slane %v109, %v113
    %v116 = vadd.f32 %v101, %v114
    %v117 = vadd.f32 %v102, %v114
    %v118 = vadd.f32 %v103, %v114
    %v119 = vadd.f32 %v104, %v114
    %v120 = vadd.f32 %v105, %v114
    %v121 = vadd.f32 %v106, %v114
    %v122 = vadd.f32 %v107, %v114
    %v123 = vadd.f32 %v108, %v114
    %124 = vst [vmem:[#allocation2] sm:$0xff] %v116
    %125 = vst [vmem:[#allocation2 + $0x8] sm:$0xff] %v117
    %126 = vst [vmem:[#allocation2 + $0x10] sm:$0xff] %v118
    %127 = vst [vmem:[#allocation2 + $0x18] sm:$0xff] %v119
    %128 = vst [vmem:[#allocation2 + $0x20] sm:$0xff] %v120
    %129 = vst [vmem:[#allocation2 + $0x28] sm:$0xff] %v121
    %130 = vst [vmem:[#allocation2 + $0x30] sm:$0xff] %v122
    %131 = vst [vmem:[#allocation2 + $0x38] sm:$0xff] %v123
    %v132 = vld [vmem:[%s2] sm:$0xff]
    %v133 = vld [vmem:[%s2 + $0x8] sm:$0xff]
    %v134 = vld [vmem:[%s2 + $0x10] sm:$0xff]
    %v135 = vld [vmem:[%s2 + $0x18] sm:$0xff]
    %v136 = vld [vmem:[#allocation2] sm:$0xff]
    %vm137 = vcmask 261120
    %v139 = vsel %vm137, 0.0, 0
    %141 = vmatprep.subr.mxu0 0.0
    %142 = vmatpush1.msra.mxu0 %v132
    %143 = vmatprep.subr.mxu0 0.0
    %144 = vmatpush1.msra.mxu0 %v133
    %145 = vmatprep.subr.mxu0 0.0
    %146 = vmatpush1.msra.mxu0 %v134
    %147 = vmatprep.subr.mxu0 0.0
    %148 = vmatpush1.msra.mxu0 %v135
    %149 = vmatprep.subr.mxu0 0.0
    %150 = vmatpush1.msra.mxu0 0.0
    %151 = vmatprep.subr.mxu0 0.0
    %152 = vmatpush1.msra.mxu0 0.0
    %153 = vmatprep.subr.mxu0 0.0
    %154 = vmatpush1.msra.mxu0 0.0
    %155 = vmatprep.subr.mxu0 0.0
    %156 = vmatpush1.msra.mxu0 0.0
    %157 = vmatprep.subr.mxu0 0.0
    %158 = vmatpush1.msra.mxu0 0.0
    %159 = vmatprep.subr.mxu0 0.0
    %160 = vmatpush1.msra.mxu0 0.0
    %161 = vmatprep.subr.mxu0 0.0
    %162 = vmatpush1.msra.mxu0 0.0
    %163 = vmatprep.subr.mxu0 0.0
    %164 = vmatpush1.msra.mxu0 0.0
    %165 = vmatprep.subr.mxu0 0.0
    %166 = vmatpush1.msra.mxu0 0.0
    %167 = vmatprep.subr.mxu0 0.0
    %168 = vmatpush1.msra.mxu0 0.0
    %169 = vmatprep.subr.mxu0 0.0
    %170 = vmatpush1.msra.mxu0 0.0
    %171 = vmatprep.subr.mxu0 0.0
    %172 = vmatpush1.msra.mxu0 0.0
    %173 = vmatprep.subr.mxu0 0.0
    %174 = vmatpush1.msra.mxu0 0.0
    %175 = vmatprep.subr.mxu0 0.0
    %176 = vmatpush1.msra.mxu0 0.0
    %177 = vmatprep.subr.mxu0 0.0
    %178 = vmatpush1.msra.mxu0 0.0
    %179 = vmatprep.subr.mxu0 0.0
    %180 = vmatpush1.msra.mxu0 0.0
    %181 = vmatprep.subr.mxu0 0.0
    %182 = vmatpush1.msra.mxu0 0.0
    %183 = vmatprep.subr.mxu0 0.0
    %184 = vmatpush1.msra.mxu0 0.0
    %185 = vmatprep.subr.mxu0 0.0
    %186 = vmatpush1.msra.mxu0 0.0
    %187 = vmatprep.subr.mxu0 0.0
    %188 = vmatpush1.msra.mxu0 0.0
    %189 = vmatprep.subr.mxu0 0.0
    %190 = vmatpush1.msra.mxu0 0.0
    %191 = vmatprep.subr.mxu0 0.0
    %192 = vmatpush1.msra.mxu0 0.0
    %193 = vmatprep.subr.mxu0 0.0
    %194 = vmatpush1.msra.mxu0 0.0
    %195 = vmatprep.subr.mxu0 0.0
    %196 = vmatpush1.msra.mxu0 0.0
    %197 = vmatprep.subr.mxu0 0.0
    %198 = vmatpush1.msra.mxu0 0.0
    %199 = vmatprep.subr.mxu0 0.0
    %200 = vmatpush1.msra.mxu0 0.0
    %201 = vmatprep.subr.mxu0 0.0
    %202 = vmatpush1.msra.mxu0 0.0
    %203 = vmatprep.subr.mxu0 0.0
    %204 = vmatpush1.msra.mxu0 0.0
    %205 = vmatprep.mubr.f32.mxu0 0.0
    %206 = vmatmul.mubr.f32.gmra.mrb[0].mxu0 %v139
    %v207 = vpop.f32.mrb[0].mxu0
    %v208 = vadd.f32 0.0, %v207
    %v209 = vpop.f32.mrb[0].mxu0
    %210 = vdwg.mxu0
    %v211 = vadd.f32 %v136, %v208
    %v212 = vxor.u32 %v211, 2147483648
    %v213 = vmul.f32 %v212, 1.442695
    %v214 = vpow.pop %v213
    %v215 = vadd.f32 %v214, 1.0
    %v216 = vrcp.pop %v215
    %v217 = vmul.f32 1.0, %v216
    %v218 = vtanh.pop %v211
    %v219 = vmul.f32 %v217, 0.0
    %221 = vrot.lane.b32.xlu0 %v218, 32
    %v222 = vpop.permute.xlu0 %221
    %v224 = vmul.f32 %v217, %v222
    %226 = vrot.lane.b32.xlu0 %v224, 32
    %v227 = vpop.permute.xlu0 %226
    %v229 = vadd.f32 %v219, %v227
    %v230 = vtanh.pop %v229
    %232 = vrot.lane.b32.xlu0 %v230, 32
    %v233 = vpop.permute.xlu0 %232
    %v235 = vmul.f32 %v217, %v233
    %s236 = scalar_lea.vmem [#allocation2], 8
    %v237 = vld [vmem:[%s236] sm:$0xff]
    %239 = vrot.lane.b32.xlu0 %v235, 64
    %v240 = vpop.permute.xlu0 %239
    %v241 = vsel %vm137, %v240, 0
    %243 = vmatprep.subr.mxu0 0.0
    %244 = vmatpush1.msra.mxu0 %v132
    %245 = vmatprep.subr.mxu0 0.0
    %246 = vmatpush1.msra.mxu0 %v133
    %247 = vmatprep.subr.mxu0 0.0
    %248 = vmatpush1.msra.mxu0 %v134
    %249 = vmatprep.subr.mxu0 0.0
    %250 = vmatpush1.msra.mxu0 %v135
    %251 = vmatprep.subr.mxu0 0.0
    %252 = vmatpush1.msra.mxu0 0.0
    %253 = vmatprep.subr.mxu0 0.0
    %254 = vmatpush1.msra.mxu0 0.0
    %255 = vmatprep.subr.mxu0 0.0
    %256 = vmatpush1.msra.mxu0 0.0
    %257 = vmatprep.subr.mxu0 0.0
    %258 = vmatpush1.msra.mxu0 0.0
    %259 = vmatprep.subr.mxu0 0.0
    %260 = vmatpush1.msra.mxu0 0.0
    %261 = vmatprep.subr.mxu0 0.0
    %262 = vmatpush1.msra.mxu0 0.0
    %263 = vmatprep.subr.mxu0 0.0
    %264 = vmatpush1.msra.mxu0 0.0
    %265 = vmatprep.subr.mxu0 0.0
    %266 = vmatpush1.msra.mxu0 0.0
    %267 = vmatprep.subr.mxu0 0.0
    %268 = vmatpush1.msra.mxu0 0.0
    %269 = vmatprep.subr.mxu0 0.0
    %270 = vmatpush1.msra.mxu0 0.0
    %271 = vmatprep.subr.mxu0 0.0
    %272 = vmatpush1.msra.mxu0 0.0
    %273 = vmatprep.subr.mxu0 0.0
    %274 = vmatpush1.msra.mxu0 0.0
    %275 = vmatprep.subr.mxu0 0.0
    %276 = vmatpush1.msra.mxu0 0.0
    %277 = vmatprep.subr.mxu0 0.0
    %278 = vmatpush1.msra.mxu0 0.0
    %279 = vmatprep.subr.mxu0 0.0
    %280 = vmatpush1.msra.mxu0 0.0
    %281 = vmatprep.subr.mxu0 0.0
    %282 = vmatpush1.msra.mxu0 0.0
    %283 = vmatprep.subr.mxu0 0.0
    %284 = vmatpush1.msra.mxu0 0.0
    %285 = vmatprep.subr.mxu0 0.0
    %286 = vmatpush1.msra.mxu0 0.0
    %287 = vmatprep.subr.mxu0 0.0
    %288 = vmatpush1.msra.mxu0 0.0
    %289 = vmatprep.subr.mxu0 0.0
    %290 = vmatpush1.msra.mxu0 0.0
    %291 = vmatprep.subr.mxu0 0.0
    %292 = vmatpush1.msra.mxu0 0.0
    %293 = vmatprep.subr.mxu0 0.0
    %294 = vmatpush1.msra.mxu0 0.0
    %295 = vmatprep.subr.mxu0 0.0
    %296 = vmatpush1.msra.mxu0 0.0
    %297 = vmatprep.subr.mxu0 0.0
    %298 = vmatpush1.msra.mxu0 0.0
    %299 = vmatprep.subr.mxu0 0.0
    %300 = vmatpush1.msra.mxu0 0.0
    %301 = vmatprep.subr.mxu0 0.0
    %302 = vmatpush1.msra.mxu0 0.0
    %303 = vmatprep.subr.mxu0 0.0
    %304 = vmatpush1.msra.mxu0 0.0
    %305 = vmatprep.subr.mxu0 0.0
    %306 = vmatpush1.msra.mxu0 0.0
    %307 = vmatprep.mubr.f32.mxu0 0.0
    %308 = vmatmul.mubr.f32.gmra.mrb[0].mxu0 %v241
    %v309 = vpop.f32.mrb[0].mxu0
    %v310 = vadd.f32 0.0, %v309
    %v311 = vpop.f32.mrb[0].mxu0
    %312 = vdwg.mxu0
    %v313 = vadd.f32 %v237, %v310
    %v314 = vxor.u32 %v313, 2147483648
    %v315 = vmul.f32 %v314, 1.442695
    %v316 = vpow.pop %v315
    %v317 = vadd.f32 %v316, 1.0
    %v318 = vrcp.pop %v317
    %v319 = vmul.f32 1.0, %v318
    %v320 = vtanh.pop %v313
    %v321 = vmul.f32 %v319, %v229
    %323 = vrot.lane.b32.xlu0 %v320, 32
    %v324 = vpop.permute.xlu0 %323
    %v326 = vmul.f32 %v319, %v324
    %328 = vrot.lane.b32.xlu0 %v326, 32
    %v329 = vpop.permute.xlu0 %328
    %v331 = vadd.f32 %v321, %v329
    %v332 = vtanh.pop %v331
    %334 = vrot.lane.b32.xlu0 %v332, 32
    %v335 = vpop.permute.xlu0 %334
    %v337 = vmul.f32 %v319, %v335
    %s338 = scalar_lea.vmem [#allocation2], 16
    %v339 = vld [vmem:[%s338] sm:$0xff]
    %341 = vrot.lane.b32.xlu0 %v337, 64
    %v342 = vpop.permute.xlu0 %341
    %v343 = vsel %vm137, %v342, 0
    %345 = vmatprep.subr.mxu0 0.0
    %346 = vmatpush1.msra.mxu0 %v132
    %347 = vmatprep.subr.mxu0 0.0
    %348 = vmatpush1.msra.mxu0 %v133
    %349 = vmatprep.subr.mxu0 0.0
    %350 = vmatpush1.msra.mxu0 %v134
    %351 = vmatprep.subr.mxu0 0.0
    %352 = vmatpush1.msra.mxu0 %v135
    %353 = vmatprep.subr.mxu0 0.0
    %354 = vmatpush1.msra.mxu0 0.0
    %355 = vmatprep.subr.mxu0 0.0
    %356 = vmatpush1.msra.mxu0 0.0
    %357 = vmatprep.subr.mxu0 0.0
    %358 = vmatpush1.msra.mxu0 0.0
    %359 = vmatprep.subr.mxu0 0.0
    %360 = vmatpush1.msra.mxu0 0.0
    %361 = vmatprep.subr.mxu0 0.0
    %362 = vmatpush1.msra.mxu0 0.0
    %363 = vmatprep.subr.mxu0 0.0
    %364 = vmatpush1.msra.mxu0 0.0
    %365 = vmatprep.subr.mxu0 0.0
    %366 = vmatpush1.msra.mxu0 0.0
    %367 = vmatprep.subr.mxu0 0.0
    %368 = vmatpush1.msra.mxu0 0.0
    %369 = vmatprep.subr.mxu0 0.0
    %370 = vmatpush1.msra.mxu0 0.0
    %371 = vmatprep.subr.mxu0 0.0
    %372 = vmatpush1.msra.mxu0 0.0
    %373 = vmatprep.subr.mxu0 0.0
    %374 = vmatpush1.msra.mxu0 0.0
    %375 = vmatprep.subr.mxu0 0.0
    %376 = vmatpush1.msra.mxu0 0.0
    %377 = vmatprep.subr.mxu0 0.0
    %378 = vmatpush1.msra.mxu0 0.0
    %379 = vmatprep.subr.mxu0 0.0
    %380 = vmatpush1.msra.mxu0 0.0
    %381 = vmatprep.subr.mxu0 0.0
    %382 = vmatpush1.msra.mxu0 0.0
    %383 = vmatprep.subr.mxu0 0.0
    %384 = vmatpush1.msra.mxu0 0.0
    %385 = vmatprep.subr.mxu0 0.0
    %386 = vmatpush1.msra.mxu0 0.0
    %387 = vmatprep.subr.mxu0 0.0
    %388 = vmatpush1.msra.mxu0 0.0
    %389 = vmatprep.subr.mxu0 0.0
    %390 = vmatpush1.msra.mxu0 0.0
    %391 = vmatprep.subr.mxu0 0.0
    %392 = vmatpush1.msra.mxu0 0.0
    %393 = vmatprep.subr.mxu0 0.0
    %394 = vmatpush1.msra.mxu0 0.0
    %395 = vmatprep.subr.mxu0 0.0
    %396 = vmatpush1.msra.mxu0 0.0
    %397 = vmatprep.subr.mxu0 0.0
    %398 = vmatpush1.msra.mxu0 0.0
    %399 = vmatprep.subr.mxu0 0.0
    %400 = vmatpush1.msra.mxu0 0.0
    %401 = vmatprep.subr.mxu0 0.0
    %402 = vmatpush1.msra.mxu0 0.0
    %403 = vmatprep.subr.mxu0 0.0
    %404 = vmatpush1.msra.mxu0 0.0
    %405 = vmatprep.subr.mxu0 0.0
    %406 = vmatpush1.msra.mxu0 0.0
    %407 = vmatprep.subr.mxu0 0.0
    %408 = vmatpush1.msra.mxu0 0.0
    %409 = vmatprep.mubr.f32.mxu0 0.0
    %410 = vmatmul.mubr.f32.gmra.mrb[0].mxu0 %v343
    %v411 = vpop.f32.mrb[0].mxu0
    %v412 = vadd.f32 0.0, %v411
    %v413 = vpop.f32.mrb[0].mxu0
    %414 = vdwg.mxu0
    %v415 = vadd.f32 %v339, %v412
    %v416 = vxor.u32 %v415, 2147483648
    %v417 = vmul.f32 %v416, 1.442695
    %v418 = vpow.pop %v417
    %v419 = vadd.f32 %v418, 1.0
    %v420 = vrcp.pop %v419
    %v421 = vmul.f32 1.0, %v420
    %v422 = vtanh.pop %v415
    %v423 = vmul.f32 %v421, %v331
    %425 = vrot.lane.b32.xlu0 %v422, 32
    %v426 = vpop.permute.xlu0 %425
    %v428 = vmul.f32 %v421, %v426
    %430 = vrot.lane.b32.xlu0 %v428, 32
    %v431 = vpop.permute.xlu0 %430
    %v433 = vadd.f32 %v423, %v431
    %v434 = vtanh.pop %v433
    %436 = vrot.lane.b32.xlu0 %v434, 32
    %v437 = vpop.permute.xlu0 %436
    %v439 = vmul.f32 %v421, %v437
    %s440 = scalar_lea.vmem [#allocation2], 24
    %v441 = vld [vmem:[%s440] sm:$0xff]
    %443 = vrot.lane.b32.xlu0 %v439, 64
    %v444 = vpop.permute.xlu0 %443
    %v445 = vsel %vm137, %v444, 0
    %447 = vmatprep.subr.mxu0 0.0
    %448 = vmatpush1.msra.mxu0 %v132
    %449 = vmatprep.subr.mxu0 0.0
    %450 = vmatpush1.msra.mxu0 %v133
    %451 = vmatprep.subr.mxu0 0.0
    %452 = vmatpush1.msra.mxu0 %v134
    %453 = vmatprep.subr.mxu0 0.0
    %454 = vmatpush1.msra.mxu0 %v135
    %455 = vmatprep.subr.mxu0 0.0
    %456 = vmatpush1.msra.mxu0 0.0
    %457 = vmatprep.subr.mxu0 0.0
    %458 = vmatpush1.msra.mxu0 0.0
    %459 = vmatprep.subr.mxu0 0.0
    %460 = vmatpush1.msra.mxu0 0.0
    %461 = vmatprep.subr.mxu0 0.0
    %462 = vmatpush1.msra.mxu0 0.0
    %463 = vmatprep.subr.mxu0 0.0
    %464 = vmatpush1.msra.mxu0 0.0
    %465 = vmatprep.subr.mxu0 0.0
    %466 = vmatpush1.msra.mxu0 0.0
    %467 = vmatprep.subr.mxu0 0.0
    %468 = vmatpush1.msra.mxu0 0.0
    %469 = vmatprep.subr.mxu0 0.0
    %470 = vmatpush1.msra.mxu0 0.0
    %471 = vmatprep.subr.mxu0 0.0
    %472 = vmatpush1.msra.mxu0 0.0
    %473 = vmatprep.subr.mxu0 0.0
    %474 = vmatpush1.msra.mxu0 0.0
    %475 = vmatprep.subr.mxu0 0.0
    %476 = vmatpush1.msra.mxu0 0.0
    %477 = vmatprep.subr.mxu0 0.0
    %478 = vmatpush1.msra.mxu0 0.0
    %479 = vmatprep.subr.mxu0 0.0
    %480 = vmatpush1.msra.mxu0 0.0
    %481 = vmatprep.subr.mxu0 0.0
    %482 = vmatpush1.msra.mxu0 0.0
    %483 = vmatprep.subr.mxu0 0.0
    %484 = vmatpush1.msra.mxu0 0.0
    %485 = vmatprep.subr.mxu0 0.0
    %486 = vmatpush1.msra.mxu0 0.0
    %487 = vmatprep.subr.mxu0 0.0
    %488 = vmatpush1.msra.mxu0 0.0
    %489 = vmatprep.subr.mxu0 0.0
    %490 = vmatpush1.msra.mxu0 0.0
    %491 = vmatprep.subr.mxu0 0.0
    %492 = vmatpush1.msra.mxu0 0.0
    %493 = vmatprep.subr.mxu0 0.0
    %494 = vmatpush1.msra.mxu0 0.0
    %495 = vmatprep.subr.mxu0 0.0
    %496 = vmatpush1.msra.mxu0 0.0
    %497 = vmatprep.subr.mxu0 0.0
    %498 = vmatpush1.msra.mxu0 0.0
    %499 = vmatprep.subr.mxu0 0.0
    %500 = vmatpush1.msra.mxu0 0.0
    %501 = vmatprep.subr.mxu0 0.0
    %502 = vmatpush1.msra.mxu0 0.0
    %503 = vmatprep.subr.mxu0 0.0
    %504 = vmatpush1.msra.mxu0 0.0
    %505 = vmatprep.subr.mxu0 0.0
    %506 = vmatpush1.msra.mxu0 0.0
    %507 = vmatprep.subr.mxu0 0.0
    %508 = vmatpush1.msra.mxu0 0.0
    %509 = vmatprep.subr.mxu0 0.0
    %510 = vmatpush1.msra.mxu0 0.0
    %511 = vmatprep.mubr.f32.mxu0 0.0
    %512 = vmatmul.mubr.f32.gmra.mrb[0].mxu0 %v445
    %v513 = vpop.f32.mrb[0].mxu0
    %v514 = vadd.f32 0.0, %v513
    %v515 = vpop.f32.mrb[0].mxu0
    %516 = vdwg.mxu0
    %v517 = vadd.f32 %v441, %v514
    %v518 = vxor.u32 %v517, 2147483648
    %v519 = vmul.f32 %v518, 1.442695
    %v520 = vpow.pop %v519
    %v521 = vadd.f32 %v520, 1.0
    %v522 = vrcp.pop %v521
    %v523 = vmul.f32 1.0, %v522
    %v524 = vtanh.pop %v517
    %v525 = vmul.f32 %v523, %v433
    %527 = vrot.lane.b32.xlu0 %v524, 32
    %v528 = vpop.permute.xlu0 %527
    %v530 = vmul.f32 %v523, %v528
    %532 = vrot.lane.b32.xlu0 %v530, 32
    %v533 = vpop.permute.xlu0 %532
    %v535 = vadd.f32 %v525, %v533
    %v536 = vtanh.pop %v535
    %538 = vrot.lane.b32.xlu0 %v536, 32
    %v539 = vpop.permute.xlu0 %538
    %v541 = vmul.f32 %v523, %v539
    %s542 = scalar_lea.vmem [#allocation2], 32
    %v543 = vld [vmem:[%s542] sm:$0xff]
    %545 = vrot.lane.b32.xlu0 %v541, 64
    %v546 = vpop.permute.xlu0 %545
    %v547 = vsel %vm137, %v546, 0
    %549 = vmatprep.subr.mxu0 0.0
    %550 = vmatpush1.msra.mxu0 %v132
    %551 = vmatprep.subr.mxu0 0.0
    %552 = vmatpush1.msra.mxu0 %v133
    %553 = vmatprep.subr.mxu0 0.0
    %554 = vmatpush1.msra.mxu0 %v134
    %555 = vmatprep.subr.mxu0 0.0
    %556 = vmatpush1.msra.mxu0 %v135
    %557 = vmatprep.subr.mxu0 0.0
    %558 = vmatpush1.msra.mxu0 0.0
    %559 = vmatprep.subr.mxu0 0.0
    %560 = vmatpush1.msra.mxu0 0.0
    %561 = vmatprep.subr.mxu0 0.0
    %562 = vmatpush1.msra.mxu0 0.0
    %563 = vmatprep.subr.mxu0 0.0
    %564 = vmatpush1.msra.mxu0 0.0
    %565 = vmatprep.subr.mxu0 0.0
    %566 = vmatpush1.msra.mxu0 0.0
    %567 = vmatprep.subr.mxu0 0.0
    %568 = vmatpush1.msra.mxu0 0.0
    %569 = vmatprep.subr.mxu0 0.0
    %570 = vmatpush1.msra.mxu0 0.0
    %571 = vmatprep.subr.mxu0 0.0
    %572 = vmatpush1.msra.mxu0 0.0
    %573 = vmatprep.subr.mxu0 0.0
    %574 = vmatpush1.msra.mxu0 0.0
    %575 = vmatprep.subr.mxu0 0.0
    %576 = vmatpush1.msra.mxu0 0.0
    %577 = vmatprep.subr.mxu0 0.0
    %578 = vmatpush1.msra.mxu0 0.0
    %579 = vmatprep.subr.mxu0 0.0
    %580 = vmatpush1.msra.mxu0 0.0
    %581 = vmatprep.subr.mxu0 0.0
    %582 = vmatpush1.msra.mxu0 0.0
    %583 = vmatprep.subr.mxu0 0.0
    %584 = vmatpush1.msra.mxu0 0.0
    %585 = vmatprep.subr.mxu0 0.0
    %586 = vmatpush1.msra.mxu0 0.0
    %587 = vmatprep.subr.mxu0 0.0
    %588 = vmatpush1.msra.mxu0 0.0
    %589 = vmatprep.subr.mxu0 0.0
    %590 = vmatpush1.msra.mxu0 0.0
    %591 = vmatprep.subr.mxu0 0.0
    %592 = vmatpush1.msra.mxu0 0.0
    %593 = vmatprep.subr.mxu0 0.0
    %594 = vmatpush1.msra.mxu0 0.0
    %595 = vmatprep.subr.mxu0 0.0
    %596 = vmatpush1.msra.mxu0 0.0
    %597 = vmatprep.subr.mxu0 0.0
    %598 = vmatpush1.msra.mxu0 0.0
    %599 = vmatprep.subr.mxu0 0.0
    %600 = vmatpush1.msra.mxu0 0.0
    %601 = vmatprep.subr.mxu0 0.0
    %602 = vmatpush1.msra.mxu0 0.0
    %603 = vmatprep.subr.mxu0 0.0
    %604 = vmatpush1.msra.mxu0 0.0
    %605 = vmatprep.subr.mxu0 0.0
    %606 = vmatpush1.msra.mxu0 0.0
    %607 = vmatprep.subr.mxu0 0.0
    %608 = vmatpush1.msra.mxu0 0.0
    %609 = vmatprep.subr.mxu0 0.0
    %610 = vmatpush1.msra.mxu0 0.0
    %611 = vmatprep.subr.mxu0 0.0
    %612 = vmatpush1.msra.mxu0 0.0
    %613 = vmatprep.mubr.f32.mxu0 0.0
    %614 = vmatmul.mubr.f32.gmra.mrb[0].mxu0 %v547
    %v615 = vpop.f32.mrb[0].mxu0
    %v616 = vadd.f32 0.0, %v615
    %v617 = vpop.f32.mrb[0].mxu0
    %618 = vdwg.mxu0
    %v619 = vadd.f32 %v543, %v616
    %v620 = vxor.u32 %v619, 2147483648
    %v621 = vmul.f32 %v620, 1.442695
    %v622 = vpow.pop %v621
    %v623 = vadd.f32 %v622, 1.0
    %v624 = vrcp.pop %v623
    %v625 = vmul.f32 1.0, %v624
    %v626 = vtanh.pop %v619
    %v627 = vmul.f32 %v625, %v535
    %629 = vrot.lane.b32.xlu0 %v626, 32
    %v630 = vpop.permute.xlu0 %629
    %v632 = vmul.f32 %v625, %v630
    %634 = vrot.lane.b32.xlu0 %v632, 32
    %v635 = vpop.permute.xlu0 %634
    %v637 = vadd.f32 %v627, %v635
    %v638 = vtanh.pop %v637
    %640 = vrot.lane.b32.xlu0 %v638, 32
    %v641 = vpop.permute.xlu0 %640
    %v643 = vmul.f32 %v625, %v641
    %s644 = scalar_lea.vmem [#allocation2], 40
    %v645 = vld [vmem:[%s644] sm:$0xff]
    %647 = vrot.lane.b32.xlu0 %v643, 64
    %v648 = vpop.permute.xlu0 %647
    %v649 = vsel %vm137, %v648, 0
    %651 = vmatprep.subr.mxu0 0.0
    %652 = vmatpush1.msra.mxu0 %v132
    %653 = vmatprep.subr.mxu0 0.0
    %654 = vmatpush1.msra.mxu0 %v133
    %655 = vmatprep.subr.mxu0 0.0
    %656 = vmatpush1.msra.mxu0 %v134
    %657 = vmatprep.subr.mxu0 0.0
    %658 = vmatpush1.msra.mxu0 %v135
    %659 = vmatprep.subr.mxu0 0.0
    %660 = vmatpush1.msra.mxu0 0.0
    %661 = vmatprep.subr.mxu0 0.0
    %662 = vmatpush1.msra.mxu0 0.0
    %663 = vmatprep.subr.mxu0 0.0
    %664 = vmatpush1.msra.mxu0 0.0
    %665 = vmatprep.subr.mxu0 0.0
    %666 = vmatpush1.msra.mxu0 0.0
    %667 = vmatprep.subr.mxu0 0.0
    %668 = vmatpush1.msra.mxu0 0.0
    %669 = vmatprep.subr.mxu0 0.0
    %670 = vmatpush1.msra.mxu0 0.0
    %671 = vmatprep.subr.mxu0 0.0
    %672 = vmatpush1.msra.mxu0 0.0
    %673 = vmatprep.subr.mxu0 0.0
    %674 = vmatpush1.msra.mxu0 0.0
    %675 = vmatprep.subr.mxu0 0.0
    %676 = vmatpush1.msra.mxu0 0.0
    %677 = vmatprep.subr.mxu0 0.0
    %678 = vmatpush1.msra.mxu0 0.0
    %679 = vmatprep.subr.mxu0 0.0
    %680 = vmatpush1.msra.mxu0 0.0
    %681 = vmatprep.subr.mxu0 0.0
    %682 = vmatpush1.msra.mxu0 0.0
    %683 = vmatprep.subr.mxu0 0.0
    %684 = vmatpush1.msra.mxu0 0.0
    %685 = vmatprep.subr.mxu0 0.0
    %686 = vmatpush1.msra.mxu0 0.0
    %687 = vmatprep.subr.mxu0 0.0
    %688 = vmatpush1.msra.mxu0 0.0
    %689 = vmatprep.subr.mxu0 0.0
    %690 = vmatpush1.msra.mxu0 0.0
    %691 = vmatprep.subr.mxu0 0.0
    %692 = vmatpush1.msra.mxu0 0.0
    %693 = vmatprep.subr.mxu0 0.0
    %694 = vmatpush1.msra.mxu0 0.0
    %695 = vmatprep.subr.mxu0 0.0
    %696 = vmatpush1.msra.mxu0 0.0
    %697 = vmatprep.subr.mxu0 0.0
    %698 = vmatpush1.msra.mxu0 0.0
    %699 = vmatprep.subr.mxu0 0.0
    %700 = vmatpush1.msra.mxu0 0.0
    %701 = vmatprep.subr.mxu0 0.0
    %702 = vmatpush1.msra.mxu0 0.0
    %703 = vmatprep.subr.mxu0 0.0
    %704 = vmatpush1.msra.mxu0 0.0
    %705 = vmatprep.subr.mxu0 0.0
    %706 = vmatpush1.msra.mxu0 0.0
    %707 = vmatprep.subr.mxu0 0.0
    %708 = vmatpush1.msra.mxu0 0.0
    %709 = vmatprep.subr.mxu0 0.0
    %710 = vmatpush1.msra.mxu0 0.0
    %711 = vmatprep.subr.mxu0 0.0
    %712 = vmatpush1.msra.mxu0 0.0
    %713 = vmatprep.subr.mxu0 0.0
    %714 = vmatpush1.msra.mxu0 0.0
    %715 = vmatprep.mubr.f32.mxu0 0.0
    %716 = vmatmul.mubr.f32.gmra.mrb[0].mxu0 %v649
    %v717 = vpop.f32.mrb[0].mxu0
    %v718 = vadd.f32 0.0, %v717
    %v719 = vpop.f32.mrb[0].mxu0
    %720 = vdwg.mxu0
    %v721 = vadd.f32 %v645, %v718
    %v722 = vxor.u32 %v721, 2147483648
    %v723 = vmul.f32 %v722, 1.442695
    %v724 = vpow.pop %v723
    %v725 = vadd.f32 %v724, 1.0
    %v726 = vrcp.pop %v725
    %v727 = vmul.f32 1.0, %v726
    %v728 = vtanh.pop %v721
    %v729 = vmul.f32 %v727, %v637
    %731 = vrot.lane.b32.xlu0 %v728, 32
    %v732 = vpop.permute.xlu0 %731
    %v734 = vmul.f32 %v727, %v732
    %736 = vrot.lane.b32.xlu0 %v734, 32
    %v737 = vpop.permute.xlu0 %736
    %v739 = vadd.f32 %v729, %v737
    %v740 = vtanh.pop %v739
    %742 = vrot.lane.b32.xlu0 %v740, 32
    %v743 = vpop.permute.xlu0 %742
    %v745 = vmul.f32 %v727, %v743
    %s746 = scalar_lea.vmem [#allocation2], 48
    %v747 = vld [vmem:[%s746] sm:$0xff]
    %749 = vrot.lane.b32.xlu0 %v745, 64
    %v750 = vpop.permute.xlu0 %749
    %v751 = vsel %vm137, %v750, 0
    %753 = vmatprep.subr.mxu0 0.0
    %754 = vmatpush1.msra.mxu0 %v132
    %755 = vmatprep.subr.mxu0 0.0
    %756 = vmatpush1.msra.mxu0 %v133
    %757 = vmatprep.subr.mxu0 0.0
    %758 = vmatpush1.msra.mxu0 %v134
    %759 = vmatprep.subr.mxu0 0.0
    %760 = vmatpush1.msra.mxu0 %v135
    %761 = vmatprep.subr.mxu0 0.0
    %762 = vmatpush1.msra.mxu0 0.0
    %763 = vmatprep.subr.mxu0 0.0
    %764 = vmatpush1.msra.mxu0 0.0
    %765 = vmatprep.subr.mxu0 0.0
    %766 = vmatpush1.msra.mxu0 0.0
    %767 = vmatprep.subr.mxu0 0.0
    %768 = vmatpush1.msra.mxu0 0.0
    %769 = vmatprep.subr.mxu0 0.0
    %770 = vmatpush1.msra.mxu0 0.0
    %771 = vmatprep.subr.mxu0 0.0
    %772 = vmatpush1.msra.mxu0 0.0
    %773 = vmatprep.subr.mxu0 0.0
    %774 = vmatpush1.msra.mxu0 0.0
    %775 = vmatprep.subr.mxu0 0.0
    %776 = vmatpush1.msra.mxu0 0.0
    %777 = vmatprep.subr.mxu0 0.0
    %778 = vmatpush1.msra.mxu0 0.0
    %779 = vmatprep.subr.mxu0 0.0
    %780 = vmatpush1.msra.mxu0 0.0
    %781 = vmatprep.subr.mxu0 0.0
    %782 = vmatpush1.msra.mxu0 0.0
    %783 = vmatprep.subr.mxu0 0.0
    %784 = vmatpush1.msra.mxu0 0.0
    %785 = vmatprep.subr.mxu0 0.0
    %786 = vmatpush1.msra.mxu0 0.0
    %787 = vmatprep.subr.mxu0 0.0
    %788 = vmatpush1.msra.mxu0 0.0
    %789 = vmatprep.subr.mxu0 0.0
    %790 = vmatpush1.msra.mxu0 0.0
    %791 = vmatprep.subr.mxu0 0.0
    %792 = vmatpush1.msra.mxu0 0.0
    %793 = vmatprep.subr.mxu0 0.0
    %794 = vmatpush1.msra.mxu0 0.0
    %795 = vmatprep.subr.mxu0 0.0
    %796 = vmatpush1.msra.mxu0 0.0
    %797 = vmatprep.subr.mxu0 0.0
    %798 = vmatpush1.msra.mxu0 0.0
    %799 = vmatprep.subr.mxu0 0.0
    %800 = vmatpush1.msra.mxu0 0.0
    %801 = vmatprep.subr.mxu0 0.0
    %802 = vmatpush1.msra.mxu0 0.0
    %803 = vmatprep.subr.mxu0 0.0
    %804 = vmatpush1.msra.mxu0 0.0
    %805 = vmatprep.subr.mxu0 0.0
    %806 = vmatpush1.msra.mxu0 0.0
    %807 = vmatprep.subr.mxu0 0.0
    %808 = vmatpush1.msra.mxu0 0.0
    %809 = vmatprep.subr.mxu0 0.0
    %810 = vmatpush1.msra.mxu0 0.0
    %811 = vmatprep.subr.mxu0 0.0
    %812 = vmatpush1.msra.mxu0 0.0
    %813 = vmatprep.subr.mxu0 0.0
    %814 = vmatpush1.msra.mxu0 0.0
    %815 = vmatprep.subr.mxu0 0.0
    %816 = vmatpush1.msra.mxu0 0.0
    %817 = vmatprep.mubr.f32.mxu0 0.0
    %818 = vmatmul.mubr.f32.gmra.mrb[0].mxu0 %v751
    %v819 = vpop.f32.mrb[0].mxu0
    %v820 = vadd.f32 0.0, %v819
    %v821 = vpop.f32.mrb[0].mxu0
    %822 = vdwg.mxu0
    %v823 = vadd.f32 %v747, %v820
    %v824 = vxor.u32 %v823, 2147483648
    %v825 = vmul.f32 %v824, 1.442695
    %v826 = vpow.pop %v825
    %v827 = vadd.f32 %v826, 1.0
    %v828 = vrcp.pop %v827
    %v829 = vmul.f32 1.0, %v828
    %v830 = vtanh.pop %v823
    %v831 = vmul.f32 %v829, %v739
    %833 = vrot.lane.b32.xlu0 %v830, 32
    %v834 = vpop.permute.xlu0 %833
    %v836 = vmul.f32 %v829, %v834
    %838 = vrot.lane.b32.xlu0 %v836, 32
    %v839 = vpop.permute.xlu0 %838
    %v841 = vadd.f32 %v831, %v839
    %v842 = vtanh.pop %v841
    %844 = vrot.lane.b32.xlu0 %v842, 32
    %v845 = vpop.permute.xlu0 %844
    %v847 = vmul.f32 %v829, %v845
    %s848 = scalar_lea.vmem [#allocation2], 56
    %v849 = vld [vmem:[%s848] sm:$0xff]
    %851 = vrot.lane.b32.xlu0 %v847, 64
    %v852 = vpop.permute.xlu0 %851
    %v853 = vsel %vm137, %v852, 0
    %855 = vmatprep.subr.mxu0 0.0
    %856 = vmatpush1.msra.mxu0 %v132
    %857 = vmatprep.subr.mxu0 0.0
    %858 = vmatpush1.msra.mxu0 %v133
    %859 = vmatprep.subr.mxu0 0.0
    %860 = vmatpush1.msra.mxu0 %v134
    %861 = vmatprep.subr.mxu0 0.0
    %862 = vmatpush1.msra.mxu0 %v135
    %863 = vmatprep.subr.mxu0 0.0
    %864 = vmatpush1.msra.mxu0 0.0
    %865 = vmatprep.subr.mxu0 0.0
    %866 = vmatpush1.msra.mxu0 0.0
    %867 = vmatprep.subr.mxu0 0.0
    %868 = vmatpush1.msra.mxu0 0.0
    %869 = vmatprep.subr.mxu0 0.0
    %870 = vmatpush1.msra.mxu0 0.0
    %871 = vmatprep.subr.mxu0 0.0
    %872 = vmatpush1.msra.mxu0 0.0
    %873 = vmatprep.subr.mxu0 0.0
    %874 = vmatpush1.msra.mxu0 0.0
    %875 = vmatprep.subr.mxu0 0.0
    %876 = vmatpush1.msra.mxu0 0.0
    %877 = vmatprep.subr.mxu0 0.0
    %878 = vmatpush1.msra.mxu0 0.0
    %879 = vmatprep.subr.mxu0 0.0
    %880 = vmatpush1.msra.mxu0 0.0
    %881 = vmatprep.subr.mxu0 0.0
    %882 = vmatpush1.msra.mxu0 0.0
    %883 = vmatprep.subr.mxu0 0.0
    %884 = vmatpush1.msra.mxu0 0.0
    %885 = vmatprep.subr.mxu0 0.0
    %886 = vmatpush1.msra.mxu0 0.0
    %887 = vmatprep.subr.mxu0 0.0
    %888 = vmatpush1.msra.mxu0 0.0
    %889 = vmatprep.subr.mxu0 0.0
    %890 = vmatpush1.msra.mxu0 0.0
    %891 = vmatprep.subr.mxu0 0.0
    %892 = vmatpush1.msra.mxu0 0.0
    %893 = vmatprep.subr.mxu0 0.0
    %894 = vmatpush1.msra.mxu0 0.0
    %895 = vmatprep.subr.mxu0 0.0
    %896 = vmatpush1.msra.mxu0 0.0
    %897 = vmatprep.subr.mxu0 0.0
    %898 = vmatpush1.msra.mxu0 0.0
    %899 = vmatprep.subr.mxu0 0.0
    %900 = vmatpush1.msra.mxu0 0.0
    %901 = vmatprep.subr.mxu0 0.0
    %902 = vmatpush1.msra.mxu0 0.0
    %903 = vmatprep.subr.mxu0 0.0
    %904 = vmatpush1.msra.mxu0 0.0
    %905 = vmatprep.subr.mxu0 0.0
    %906 = vmatpush1.msra.mxu0 0.0
    %907 = vmatprep.subr.mxu0 0.0
    %908 = vmatpush1.msra.mxu0 0.0
    %909 = vmatprep.subr.mxu0 0.0
    %910 = vmatpush1.msra.mxu0 0.0
    %911 = vmatprep.subr.mxu0 0.0
    %912 = vmatpush1.msra.mxu0 0.0
    %913 = vmatprep.subr.mxu0 0.0
    %914 = vmatpush1.msra.mxu0 0.0
    %915 = vmatprep.subr.mxu0 0.0
    %916 = vmatpush1.msra.mxu0 0.0
    %917 = vmatprep.subr.mxu0 0.0
    %918 = vmatpush1.msra.mxu0 0.0
    %919 = vmatprep.mubr.f32.mxu0 0.0
    %920 = vmatmul.mubr.f32.gmra.mrb[0].mxu0 %v853
    %v921 = vpop.f32.mrb[0].mxu0
    %v922 = vadd.f32 0.0, %v921
    %v923 = vpop.f32.mrb[0].mxu0
    %924 = vdwg.mxu0
    %v925 = vadd.f32 %v849, %v922
    %v926 = vxor.u32 %v925, 2147483648
    %v927 = vmul.f32 %v926, 1.442695
    %v928 = vpow.pop %v927
    %v929 = vadd.f32 %v928, 1.0
    %v930 = vrcp.pop %v929
    %v931 = vmul.f32 1.0, %v930
    %v932 = vtanh.pop %v925
    %v933 = vmul.f32 %v931, %v841
    %935 = vrot.lane.b32.xlu0 %v932, 32
    %v936 = vpop.permute.xlu0 %935
    %v938 = vmul.f32 %v931, %v936
    %940 = vrot.lane.b32.xlu0 %v938, 32
    %v941 = vpop.permute.xlu0 %940
    %v943 = vadd.f32 %v933, %v941
    %v944 = vtanh.pop %v943
    %946 = vrot.lane.b32.xlu0 %v944, 32
    %v947 = vpop.permute.xlu0 %946
    %v949 = vmul.f32 %v931, %v947
    %v950 = vld [vmem:[%s4] sm:$0xff]
    %v951 = vld [vmem:[%s4 + $0x8] sm:$0xff]
    %v952 = vld [vmem:[%s4 + $0x10] sm:$0xff]
    %v953 = vld [vmem:[%s4 + $0x18] sm:$0xff]
    %v954 = vld [vmem:[%s5] sm:$0x1]
    %v956 = vlaneseq
    %v957 = vshrl.u32 %v956, 7
    %v958 = vsub.s32 0, %v957
    %v959 = vrot.slane %v954, %v958
    %962 = vrot.lane.b32.xlu0 %v949, 64
    %v963 = vpop.permute.xlu0 %962
    %v964 = vsel %vm137, %v963, 0
    %966 = vmatprep.subr.mxu0 0.0
    %967 = vmatpush1.msra.mxu0 %v950
    %968 = vmatprep.subr.mxu0 0.0
    %969 = vmatpush1.msra.mxu0 %v951
    %970 = vmatprep.subr.mxu0 0.0
    %971 = vmatpush1.msra.mxu0 %v952
    %972 = vmatprep.subr.mxu0 0.0
    %973 = vmatpush1.msra.mxu0 %v953
    %974 = vmatprep.subr.mxu0 0.0
    %975 = vmatpush1.msra.mxu0 0.0
    %976 = vmatprep.subr.mxu0 0.0
    %977 = vmatpush1.msra.mxu0 0.0
    %978 = vmatprep.subr.mxu0 0.0
    %979 = vmatpush1.msra.mxu0 0.0
    %980 = vmatprep.subr.mxu0 0.0
    %981 = vmatpush1.msra.mxu0 0.0
    %982 = vmatprep.subr.mxu0 0.0
    %983 = vmatpush1.msra.mxu0 0.0
    %984 = vmatprep.subr.mxu0 0.0
    %985 = vmatpush1.msra.mxu0 0.0
    %986 = vmatprep.subr.mxu0 0.0
    %987 = vmatpush1.msra.mxu0 0.0
    %988 = vmatprep.subr.mxu0 0.0
    %989 = vmatpush1.msra.mxu0 0.0
    %990 = vmatprep.subr.mxu0 0.0
    %991 = vmatpush1.msra.mxu0 0.0
    %992 = vmatprep.subr.mxu0 0.0
    %993 = vmatpush1.msra.mxu0 0.0
    %994 = vmatprep.subr.mxu0 0.0
    %995 = vmatpush1.msra.mxu0 0.0
    %996 = vmatprep.subr.mxu0 0.0
    %997 = vmatpush1.msra.mxu0 0.0
    %998 = vmatprep.subr.mxu0 0.0
    %999 = vmatpush1.msra.mxu0 0.0
    %1000 = vmatprep.subr.mxu0 0.0
    %1001 = vmatpush1.msra.mxu0 0.0
    %1002 = vmatprep.subr.mxu0 0.0
    %1003 = vmatpush1.msra.mxu0 0.0
    %1004 = vmatprep.subr.mxu0 0.0
    %1005 = vmatpush1.msra.mxu0 0.0
    %1006 = vmatprep.subr.mxu0 0.0
    %1007 = vmatpush1.msra.mxu0 0.0
    %1008 = vmatprep.subr.mxu0 0.0
    %1009 = vmatpush1.msra.mxu0 0.0
    %1010 = vmatprep.subr.mxu0 0.0
    %1011 = vmatpush1.msra.mxu0 0.0
    %1012 = vmatprep.subr.mxu0 0.0
    %1013 = vmatpush1.msra.mxu0 0.0
    %1014 = vmatprep.subr.mxu0 0.0
    %1015 = vmatpush1.msra.mxu0 0.0
    %1016 = vmatprep.subr.mxu0 0.0
    %1017 = vmatpush1.msra.mxu0 0.0
    %1018 = vmatprep.subr.mxu0 0.0
    %1019 = vmatpush1.msra.mxu0 0.0
    %1020 = vmatprep.subr.mxu0 0.0
    %1021 = vmatpush1.msra.mxu0 0.0
    %1022 = vmatprep.subr.mxu0 0.0
    %1023 = vmatpush1.msra.mxu0 0.0
    %1024 = vmatprep.subr.mxu0 0.0
    %1025 = vmatpush1.msra.mxu0 0.0
    %1026 = vmatprep.subr.mxu0 0.0
    %1027 = vmatpush1.msra.mxu0 0.0
    %1028 = vmatprep.subr.mxu0 0.0
    %1029 = vmatpush1.msra.mxu0 0.0
    %1030 = vmatprep.mubr.f32.mxu0 0.0
    %1031 = vmatmul.mubr.f32.gmra.mrb[0].mxu0 %v964
    %v1032 = vpop.f32.mrb[0].mxu0
    %v1033 = vadd.f32 %v959, %v1032
    %v1034 = vpop.f32.mrb[0].mxu0
    %1035 = vdwg.mxu0
    %vm1036 = vcmask 64512
    %1037 = vst.msk [vmem:[#allocation5] sm:$0xff] %vm1036, %v1033
    %v1038 = vld [vmem:[%s6] sm:$0xff]
    %v1039 = vld [vmem:[%s7] sm:$0x1]
    %v1041 = vlaneseq
    %v1042 = vshrl.u32 %v1041, 7
    %v1043 = vsub.s32 0, %v1042
    %v1044 = vrot.slane %v1039, %v1043
    %v1047 = vsel %vm1036, %v1033, 0
    %1049 = vmatprep.subr.mxu0 0.0
    %1050 = vmatpush1.msra.mxu0 %v1038
    %1051 = vmatprep.subr.mxu0 0.0
    %1052 = vmatpush1.msra.mxu0 0.0
    %1053 = vmatprep.subr.mxu0 0.0
    %1054 = vmatpush1.msra.mxu0 0.0
    %1055 = vmatprep.subr.mxu0 0.0
    %1056 = vmatpush1.msra.mxu0 0.0
    %1057 = vmatprep.subr.mxu0 0.0
    %1058 = vmatpush1.msra.mxu0 0.0
    %1059 = vmatprep.subr.mxu0 0.0
    %1060 = vmatpush1.msra.mxu0 0.0
    %1061 = vmatprep.subr.mxu0 0.0
    %1062 = vmatpush1.msra.mxu0 0.0
    %1063 = vmatprep.subr.mxu0 0.0
    %1064 = vmatpush1.msra.mxu0 0.0
    %1065 = vmatprep.subr.mxu0 0.0
    %1066 = vmatpush1.msra.mxu0 0.0
    %1067 = vmatprep.subr.mxu0 0.0
    %1068 = vmatpush1.msra.mxu0 0.0
    %1069 = vmatprep.subr.mxu0 0.0
    %1070 = vmatpush1.msra.mxu0 0.0
    %1071 = vmatprep.subr.mxu0 0.0
    %1072 = vmatpush1.msra.mxu0 0.0
    %1073 = vmatprep.subr.mxu0 0.0
    %1074 = vmatpush1.msra.mxu0 0.0
    %1075 = vmatprep.subr.mxu0 0.0
    %1076 = vmatpush1.msra.mxu0 0.0
    %1077 = vmatprep.subr.mxu0 0.0
    %1078 = vmatpush1.msra.mxu0 0.0
    %1079 = vmatprep.subr.mxu0 0.0
    %1080 = vmatpush1.msra.mxu0 0.0
    %1081 = vmatprep.subr.mxu0 0.0
    %1082 = vmatpush1.msra.mxu0 0.0
    %1083 = vmatprep.subr.mxu0 0.0
    %1084 = vmatpush1.msra.mxu0 0.0
    %1085 = vmatprep.subr.mxu0 0.0
    %1086 = vmatpush1.msra.mxu0 0.0
    %1087 = vmatprep.subr.mxu0 0.0
    %1088 = vmatpush1.msra.mxu0 0.0
    %1089 = vmatprep.subr.mxu0 0.0
    %1090 = vmatpush1.msra.mxu0 0.0
    %1091 = vmatprep.subr.mxu0 0.0
    %1092 = vmatpush1.msra.mxu0 0.0
    %1093 = vmatprep.subr.mxu0 0.0
    %1094 = vmatpush1.msra.mxu0 0.0
    %1095 = vmatprep.subr.mxu0 0.0
    %1096 = vmatpush1.msra.mxu0 0.0
    %1097 = vmatprep.subr.mxu0 0.0
    %1098 = vmatpush1.msra.mxu0 0.0
    %1099 = vmatprep.subr.mxu0 0.0
    %1100 = vmatpush1.msra.mxu0 0.0
    %1101 = vmatprep.subr.mxu0 0.0
    %1102 = vmatpush1.msra.mxu0 0.0
    %1103 = vmatprep.subr.mxu0 0.0
    %1104 = vmatpush1.msra.mxu0 0.0
    %1105 = vmatprep.subr.mxu0 0.0
    %1106 = vmatpush1.msra.mxu0 0.0
    %1107 = vmatprep.subr.mxu0 0.0
    %1108 = vmatpush1.msra.mxu0 0.0
    %1109 = vmatprep.subr.mxu0 0.0
    %1110 = vmatpush1.msra.mxu0 0.0
    %1111 = vmatprep.subr.mxu0 0.0
    %1112 = vmatpush1.msra.mxu0 0.0
    %1113 = vmatprep.mubr.f32.mxu0 0.0
    %1114 = vmatmul.mubr.f32.gmra.mrb[0].mxu0 %v1047
    %v1115 = vpop.f32.mrb[0].mxu0
    %v1116 = vadd.f32 %v1044, %v1115
    %v1117 = vpop.f32.mrb[0].mxu0
    %1118 = vdwg.mxu0
    %v1119 = vld [vmem:[%s8] sm:$0xff]
    %v1120 = vld [vmem:[%s8 + $0x8] sm:$0xff]
    %v1121 = vld [vmem:[%s8 + $0x10] sm:$0xff]
    %v1122 = vld [vmem:[%s8 + $0x18] sm:$0xff]
    %v1123 = vld [vmem:[%s9] sm:$0x1]
    %v1125 = vlaneseq
    %v1126 = vshrl.u32 %v1125, 7
    %v1127 = vsub.s32 0, %v1126
    %v1128 = vrot.slane %v1123, %v1127
    %v1131 = vsel %vm137, %v1116, 0
    %1133 = vmatprep.subr.mxu0 0.0
    %1134 = vmatpush1.msra.mxu0 %v1119
    %1135 = vmatprep.subr.mxu0 0.0
    %1136 = vmatpush1.msra.mxu0 %v1120
    %1137 = vmatprep.subr.mxu0 0.0
    %1138 = vmatpush1.msra.mxu0 %v1121
    %1139 = vmatprep.subr.mxu0 0.0
    %1140 = vmatpush1.msra.mxu0 %v1122
    %1141 = vmatprep.subr.mxu0 0.0
    %1142 = vmatpush1.msra.mxu0 0.0
    %1143 = vmatprep.subr.mxu0 0.0
    %1144 = vmatpush1.msra.mxu0 0.0
    %1145 = vmatprep.subr.mxu0 0.0
    %1146 = vmatpush1.msra.mxu0 0.0
    %1147 = vmatprep.subr.mxu0 0.0
    %1148 = vmatpush1.msra.mxu0 0.0
    %1149 = vmatprep.subr.mxu0 0.0
    %1150 = vmatpush1.msra.mxu0 0.0
    %1151 = vmatprep.subr.mxu0 0.0
    %1152 = vmatpush1.msra.mxu0 0.0
    %1153 = vmatprep.subr.mxu0 0.0
    %1154 = vmatpush1.msra.mxu0 0.0
    %1155 = vmatprep.subr.mxu0 0.0
    %1156 = vmatpush1.msra.mxu0 0.0
    %1157 = vmatprep.subr.mxu0 0.0
    %1158 = vmatpush1.msra.mxu0 0.0
    %1159 = vmatprep.subr.mxu0 0.0
    %1160 = vmatpush1.msra.mxu0 0.0
    %1161 = vmatprep.subr.mxu0 0.0
    %1162 = vmatpush1.msra.mxu0 0.0
    %1163 = vmatprep.subr.mxu0 0.0
    %1164 = vmatpush1.msra.mxu0 0.0
    %1165 = vmatprep.subr.mxu0 0.0
    %1166 = vmatpush1.msra.mxu0 0.0
    %1167 = vmatprep.subr.mxu0 0.0
    %1168 = vmatpush1.msra.mxu0 0.0
    %1169 = vmatprep.subr.mxu0 0.0
    %1170 = vmatpush1.msra.mxu0 0.0
    %1171 = vmatprep.subr.mxu0 0.0
    %1172 = vmatpush1.msra.mxu0 0.0
    %1173 = vmatprep.subr.mxu0 0.0
    %1174 = vmatpush1.msra.mxu0 0.0
    %1175 = vmatprep.subr.mxu0 0.0
    %1176 = vmatpush1.msra.mxu0 0.0
    %1177 = vmatprep.subr.mxu0 0.0
    %1178 = vmatpush1.msra.mxu0 0.0
    %1179 = vmatprep.subr.mxu0 0.0
    %1180 = vmatpush1.msra.mxu0 0.0
    %1181 = vmatprep.subr.mxu0 0.0
    %1182 = vmatpush1.msra.mxu0 0.0
    %1183 = vmatprep.subr.mxu0 0.0
    %1184 = vmatpush1.msra.mxu0 0.0
    %1185 = vmatprep.subr.mxu0 0.0
    %1186 = vmatpush1.msra.mxu0 0.0
    %1187 = vmatprep.subr.mxu0 0.0
    %1188 = vmatpush1.msra.mxu0 0.0
    %1189 = vmatprep.subr.mxu0 0.0
    %1190 = vmatpush1.msra.mxu0 0.0
    %1191 = vmatprep.subr.mxu0 0.0
    %1192 = vmatpush1.msra.mxu0 0.0
    %1193 = vmatprep.subr.mxu0 0.0
    %1194 = vmatpush1.msra.mxu0 0.0
    %1195 = vmatprep.subr.mxu0 0.0
    %1196 = vmatpush1.msra.mxu0 0.0
    %1197 = vmatprep.mubr.f32.mxu0 0.0
    %1198 = vmatmul.mubr.f32.gmra.mrb[0].mxu0 %v1131
    %v1199 = vpop.f32.mrb[0].mxu0
    %v1200 = vadd.f32 %v1128, %v1199
    %v1201 = vpop.f32.mrb[0].mxu0
    %1202 = vdwg.mxu0
    %v1203 = vxor.u32 %v1200, 2147483648
    %v1204 = vmul.f32 %v1203, 1.442695
    %v1205 = vpow.pop %v1204
    %v1206 = vadd.f32 %v1205, 1.0
    %v1207 = vrcp.pop %v1206
    %v1208 = vmul.f32 1.0, %v1207
    %v1209 = vtanh.pop %v1200
    %v1210 = vmul.f32 %v1208, 0.0
    %1212 = vrot.lane.b32.xlu0 %v1209, 32
    %v1213 = vpop.permute.xlu0 %1212
    %v1215 = vmul.f32 %v1208, %v1213
    %1217 = vrot.lane.b32.xlu0 %v1215, 32
    %v1218 = vpop.permute.xlu0 %1217
    %v1220 = vadd.f32 %v1210, %v1218
    %v1221 = vtanh.pop %v1220
    %1223 = vrot.lane.b32.xlu0 %v1221, 32
    %v1224 = vpop.permute.xlu0 %1223
    %v1226 = vmul.f32 %v1208, %v1224
    %1228 = vrot.lane.b32.xlu0 %v1226, 64
    %v1229 = vpop.permute.xlu0 %1228
    %1231 = vst.msk [vmem:[#allocation3] sm:$0xff] %vm137, %v1229
    %v1232 = vsel %vm137, %v1229, 0
    %1234 = vmatprep.subr.mxu0 0.0
    %1235 = vmatpush1.msra.mxu0 %v1119
    %1236 = vmatprep.subr.mxu0 0.0
    %1237 = vmatpush1.msra.mxu0 %v1120
    %1238 = vmatprep.subr.mxu0 0.0
    %1239 = vmatpush1.msra.mxu0 %v1121
    %1240 = vmatprep.subr.mxu0 0.0
    %1241 = vmatpush1.msra.mxu0 %v1122
    %1242 = vmatprep.subr.mxu0 0.0
    %1243 = vmatpush1.msra.mxu0 0.0
    %1244 = vmatprep.subr.mxu0 0.0
    %1245 = vmatpush1.msra.mxu0 0.0
    %1246 = vmatprep.subr.mxu0 0.0
    %1247 = vmatpush1.msra.mxu0 0.0
    %1248 = vmatprep.subr.mxu0 0.0
    %1249 = vmatpush1.msra.mxu0 0.0
    %1250 = vmatprep.subr.mxu0 0.0
    %1251 = vmatpush1.msra.mxu0 0.0
    %1252 = vmatprep.subr.mxu0 0.0
    %1253 = vmatpush1.msra.mxu0 0.0
    %1254 = vmatprep.subr.mxu0 0.0
    %1255 = vmatpush1.msra.mxu0 0.0
    %1256 = vmatprep.subr.mxu0 0.0
    %1257 = vmatpush1.msra.mxu0 0.0
    %1258 = vmatprep.subr.mxu0 0.0
    %1259 = vmatpush1.msra.mxu0 0.0
    %1260 = vmatprep.subr.mxu0 0.0
    %1261 = vmatpush1.msra.mxu0 0.0
    %1262 = vmatprep.subr.mxu0 0.0
    %1263 = vmatpush1.msra.mxu0 0.0
    %1264 = vmatprep.subr.mxu0 0.0
    %1265 = vmatpush1.msra.mxu0 0.0
    %1266 = vmatprep.subr.mxu0 0.0
    %1267 = vmatpush1.msra.mxu0 0.0
    %1268 = vmatprep.subr.mxu0 0.0
    %1269 = vmatpush1.msra.mxu0 0.0
    %1270 = vmatprep.subr.mxu0 0.0
    %1271 = vmatpush1.msra.mxu0 0.0
    %1272 = vmatprep.subr.mxu0 0.0
    %1273 = vmatpush1.msra.mxu0 0.0
    %1274 = vmatprep.subr.mxu0 0.0
    %1275 = vmatpush1.msra.mxu0 0.0
    %1276 = vmatprep.subr.mxu0 0.0
    %1277 = vmatpush1.msra.mxu0 0.0
    %1278 = vmatprep.subr.mxu0 0.0
    %1279 = vmatpush1.msra.mxu0 0.0
    %1280 = vmatprep.subr.mxu0 0.0
    %1281 = vmatpush1.msra.mxu0 0.0
    %1282 = vmatprep.subr.mxu0 0.0
    %1283 = vmatpush1.msra.mxu0 0.0
    %1284 = vmatprep.subr.mxu0 0.0
    %1285 = vmatpush1.msra.mxu0 0.0
    %1286 = vmatprep.subr.mxu0 0.0
    %1287 = vmatpush1.msra.mxu0 0.0
    %1288 = vmatprep.subr.mxu0 0.0
    %1289 = vmatpush1.msra.mxu0 0.0
    %1290 = vmatprep.subr.mxu0 0.0
    %1291 = vmatpush1.msra.mxu0 0.0
    %1292 = vmatprep.subr.mxu0 0.0
    %1293 = vmatpush1.msra.mxu0 0.0
    %1294 = vmatprep.subr.mxu0 0.0
    %1295 = vmatpush1.msra.mxu0 0.0
    %1296 = vmatprep.subr.mxu0 0.0
    %1297 = vmatpush1.msra.mxu0 0.0
    %1298 = vmatprep.mubr.f32.mxu0 0.0
    %1299 = vmatmul.mubr.f32.gmra.mrb[0].mxu0 %v1232
    %v1300 = vpop.f32.mrb[0].mxu0
    %v1301 = vadd.f32 %v1128, %v1300
    %v1302 = vpop.f32.mrb[0].mxu0
    %1303 = vdwg.mxu0
    %v1304 = vxor.u32 %v1301, 2147483648
    %v1305 = vmul.f32 %v1304, 1.442695
    %v1306 = vpow.pop %v1305
    %v1307 = vadd.f32 %v1306, 1.0
    %v1308 = vrcp.pop %v1307
    %v1309 = vmul.f32 1.0, %v1308
    %v1310 = vtanh.pop %v1301
    %v1311 = vmul.f32 %v1309, %v1220
    %1313 = vrot.lane.b32.xlu0 %v1310, 32
    %v1314 = vpop.permute.xlu0 %1313
    %v1316 = vmul.f32 %v1309, %v1314
    %1318 = vrot.lane.b32.xlu0 %v1316, 32
    %v1319 = vpop.permute.xlu0 %1318
    %v1321 = vadd.f32 %v1311, %v1319
    %v1322 = vtanh.pop %v1321
    %1324 = vrot.lane.b32.xlu0 %v1322, 32
    %v1325 = vpop.permute.xlu0 %1324
    %v1327 = vmul.f32 %v1309, %v1325
    %1329 = vrot.lane.b32.xlu0 %v1327, 64
    %v1330 = vpop.permute.xlu0 %1329
    %s1332 = scalar_lea.vmem [#allocation3], 8
    %1333 = vst.msk [vmem:[%s1332] sm:$0xff] %vm137, %v1330
    %v1334 = vsel %vm137, %v1330, 0
    %1336 = vmatprep.subr.mxu0 0.0
    %1337 = vmatpush1.msra.mxu0 %v1119
    %1338 = vmatprep.subr.mxu0 0.0
    %1339 = vmatpush1.msra.mxu0 %v1120
    %1340 = vmatprep.subr.mxu0 0.0
    %1341 = vmatpush1.msra.mxu0 %v1121
    %1342 = vmatprep.subr.mxu0 0.0
    %1343 = vmatpush1.msra.mxu0 %v1122
    %1344 = vmatprep.subr.mxu0 0.0
    %1345 = vmatpush1.msra.mxu0 0.0
    %1346 = vmatprep.subr.mxu0 0.0
    %1347 = vmatpush1.msra.mxu0 0.0
    %1348 = vmatprep.subr.mxu0 0.0
    %1349 = vmatpush1.msra.mxu0 0.0
    %1350 = vmatprep.subr.mxu0 0.0
    %1351 = vmatpush1.msra.mxu0 0.0
    %1352 = vmatprep.subr.mxu0 0.0
    %1353 = vmatpush1.msra.mxu0 0.0
    %1354 = vmatprep.subr.mxu0 0.0
    %1355 = vmatpush1.msra.mxu0 0.0
    %1356 = vmatprep.subr.mxu0 0.0
    %1357 = vmatpush1.msra.mxu0 0.0
    %1358 = vmatprep.subr.mxu0 0.0
    %1359 = vmatpush1.msra.mxu0 0.0
    %1360 = vmatprep.subr.mxu0 0.0
    %1361 = vmatpush1.msra.mxu0 0.0
    %1362 = vmatprep.subr.mxu0 0.0
    %1363 = vmatpush1.msra.mxu0 0.0
    %1364 = vmatprep.subr.mxu0 0.0
    %1365 = vmatpush1.msra.mxu0 0.0
    %1366 = vmatprep.subr.mxu0 0.0
    %1367 = vmatpush1.msra.mxu0 0.0
    %1368 = vmatprep.subr.mxu0 0.0
    %1369 = vmatpush1.msra.mxu0 0.0
    %1370 = vmatprep.subr.mxu0 0.0
    %1371 = vmatpush1.msra.mxu0 0.0
    %1372 = vmatprep.subr.mxu0 0.0
    %1373 = vmatpush1.msra.mxu0 0.0
    %1374 = vmatprep.subr.mxu0 0.0
    %1375 = vmatpush1.msra.mxu0 0.0
    %1376 = vmatprep.subr.mxu0 0.0
    %1377 = vmatpush1.msra.mxu0 0.0
    %1378 = vmatprep.subr.mxu0 0.0
    %1379 = vmatpush1.msra.mxu0 0.0
    %1380 = vmatprep.subr.mxu0 0.0
    %1381 = vmatpush1.msra.mxu0 0.0
    %1382 = vmatprep.subr.mxu0 0.0
    %1383 = vmatpush1.msra.mxu0 0.0
    %1384 = vmatprep.subr.mxu0 0.0
    %1385 = vmatpush1.msra.mxu0 0.0
    %1386 = vmatprep.subr.mxu0 0.0
    %1387 = vmatpush1.msra.mxu0 0.0
    %1388 = vmatprep.subr.mxu0 0.0
    %1389 = vmatpush1.msra.mxu0 0.0
    %1390 = vmatprep.subr.mxu0 0.0
    %1391 = vmatpush1.msra.mxu0 0.0
    %1392 = vmatprep.subr.mxu0 0.0
    %1393 = vmatpush1.msra.mxu0 0.0
    %1394 = vmatprep.subr.mxu0 0.0
    %1395 = vmatpush1.msra.mxu0 0.0
    %1396 = vmatprep.subr.mxu0 0.0
    %1397 = vmatpush1.msra.mxu0 0.0
    %1398 = vmatprep.subr.mxu0 0.0
    %1399 = vmatpush1.msra.mxu0 0.0
    %1400 = vmatprep.mubr.f32.mxu0 0.0
    %1401 = vmatmul.mubr.f32.gmra.mrb[0].mxu0 %v1334
    %v1402 = vpop.f32.mrb[0].mxu0
    %v1403 = vadd.f32 %v1128, %v1402
    %v1404 = vpop.f32.mrb[0].mxu0
    %1405 = vdwg.mxu0
    %v1406 = vxor.u32 %v1403, 2147483648
    %v1407 = vmul.f32 %v1406, 1.442695
    %v1408 = vpow.pop %v1407
    %v1409 = vadd.f32 %v1408, 1.0
    %v1410 = vrcp.pop %v1409
    %v1411 = vmul.f32 1.0, %v1410
    %v1412 = vtanh.pop %v1403
    %v1413 = vmul.f32 %v1411, %v1321
    %1415 = vrot.lane.b32.xlu0 %v1412, 32
    %v1416 = vpop.permute.xlu0 %1415
    %v1418 = vmul.f32 %v1411, %v1416
    %1420 = vrot.lane.b32.xlu0 %v1418, 32
    %v1421 = vpop.permute.xlu0 %1420
    %v1423 = vadd.f32 %v1413, %v1421
    %v1424 = vtanh.pop %v1423
    %1426 = vrot.lane.b32.xlu0 %v1424, 32
    %v1427 = vpop.permute.xlu0 %1426
    %v1429 = vmul.f32 %v1411, %v1427
    %1431 = vrot.lane.b32.xlu0 %v1429, 64
    %v1432 = vpop.permute.xlu0 %1431
    %s1434 = scalar_lea.vmem [#allocation3], 16
    %1435 = vst.msk [vmem:[%s1434] sm:$0xff] %vm137, %v1432
    %v1436 = vsel %vm137, %v1432, 0
    %1438 = vmatprep.subr.mxu0 0.0
    %1439 = vmatpush1.msra.mxu0 %v1119
    %1440 = vmatprep.subr.mxu0 0.0
    %1441 = vmatpush1.msra.mxu0 %v1120
    %1442 = vmatprep.subr.mxu0 0.0
    %1443 = vmatpush1.msra.mxu0 %v1121
    %1444 = vmatprep.subr.mxu0 0.0
    %1445 = vmatpush1.msra.mxu0 %v1122
    %1446 = vmatprep.subr.mxu0 0.0
    %1447 = vmatpush1.msra.mxu0 0.0
    %1448 = vmatprep.subr.mxu0 0.0
    %1449 = vmatpush1.msra.mxu0 0.0
    %1450 = vmatprep.subr.mxu0 0.0
    %1451 = vmatpush1.msra.mxu0 0.0
    %1452 = vmatprep.subr.mxu0 0.0
    %1453 = vmatpush1.msra.mxu0 0.0
    %1454 = vmatprep.subr.mxu0 0.0
    %1455 = vmatpush1.msra.mxu0 0.0
    %1456 = vmatprep.subr.mxu0 0.0
    %1457 = vmatpush1.msra.mxu0 0.0
    %1458 = vmatprep.subr.mxu0 0.0
    %1459 = vmatpush1.msra.mxu0 0.0
    %1460 = vmatprep.subr.mxu0 0.0
    %1461 = vmatpush1.msra.mxu0 0.0
    %1462 = vmatprep.subr.mxu0 0.0
    %1463 = vmatpush1.msra.mxu0 0.0
    %1464 = vmatprep.subr.mxu0 0.0
    %1465 = vmatpush1.msra.mxu0 0.0
    %1466 = vmatprep.subr.mxu0 0.0
    %1467 = vmatpush1.msra.mxu0 0.0
    %1468 = vmatprep.subr.mxu0 0.0
    %1469 = vmatpush1.msra.mxu0 0.0
    %1470 = vmatprep.subr.mxu0 0.0
    %1471 = vmatpush1.msra.mxu0 0.0
    %1472 = vmatprep.subr.mxu0 0.0
    %1473 = vmatpush1.msra.mxu0 0.0
    %1474 = vmatprep.subr.mxu0 0.0
    %1475 = vmatpush1.msra.mxu0 0.0
    %1476 = vmatprep.subr.mxu0 0.0
    %1477 = vmatpush1.msra.mxu0 0.0
    %1478 = vmatprep.subr.mxu0 0.0
    %1479 = vmatpush1.msra.mxu0 0.0
    %1480 = vmatprep.subr.mxu0 0.0
    %1481 = vmatpush1.msra.mxu0 0.0
    %1482 = vmatprep.subr.mxu0 0.0
    %1483 = vmatpush1.msra.mxu0 0.0
    %1484 = vmatprep.subr.mxu0 0.0
    %1485 = vmatpush1.msra.mxu0 0.0
    %1486 = vmatprep.subr.mxu0 0.0
    %1487 = vmatpush1.msra.mxu0 0.0
    %1488 = vmatprep.subr.mxu0 0.0
    %1489 = vmatpush1.msra.mxu0 0.0
    %1490 = vmatprep.subr.mxu0 0.0
    %1491 = vmatpush1.msra.mxu0 0.0
    %1492 = vmatprep.subr.mxu0 0.0
    %1493 = vmatpush1.msra.mxu0 0.0
    %1494 = vmatprep.subr.mxu0 0.0
    %1495 = vmatpush1.msra.mxu0 0.0
    %1496 = vmatprep.subr.mxu0 0.0
    %1497 = vmatpush1.msra.mxu0 0.0
    %1498 = vmatprep.subr.mxu0 0.0
    %1499 = vmatpush1.msra.mxu0 0.0
    %1500 = vmatprep.subr.mxu0 0.0
    %1501 = vmatpush1.msra.mxu0 0.0
    %1502 = vmatprep.mubr.f32.mxu0 0.0
    %1503 = vmatmul.mubr.f32.gmra.mrb[0].mxu0 %v1436
    %v1504 = vpop.f32.mrb[0].mxu0
    %v1505 = vadd.f32 %v1128, %v1504
    %v1506 = vpop.f32.mrb[0].mxu0
    %1507 = vdwg.mxu0
    %v1508 = vxor.u32 %v1505, 2147483648
    %v1509 = vmul.f32 %v1508, 1.442695
    %v1510 = vpow.pop %v1509
    %v1511 = vadd.f32 %v1510, 1.0
    %v1512 = vrcp.pop %v1511
    %v1513 = vmul.f32 1.0, %v1512
    %v1514 = vtanh.pop %v1505
    %v1515 = vmul.f32 %v1513, %v1423
    %1517 = vrot.lane.b32.xlu0 %v1514, 32
    %v1518 = vpop.permute.xlu0 %1517
    %v1520 = vmul.f32 %v1513, %v1518
    %1522 = vrot.lane.b32.xlu0 %v1520, 32
    %v1523 = vpop.permute.xlu0 %1522
    %v1525 = vadd.f32 %v1515, %v1523
    %v1526 = vtanh.pop %v1525
    %1528 = vrot.lane.b32.xlu0 %v1526, 32
    %v1529 = vpop.permute.xlu0 %1528
    %v1531 = vmul.f32 %v1513, %v1529
    %1533 = vrot.lane.b32.xlu0 %v1531, 64
    %v1534 = vpop.permute.xlu0 %1533
    %s1536 = scalar_lea.vmem [#allocation3], 24
    %1537 = vst.msk [vmem:[%s1536] sm:$0xff] %vm137, %v1534
    %v1538 = vsel %vm137, %v1534, 0
    %1540 = vmatprep.subr.mxu0 0.0
    %1541 = vmatpush1.msra.mxu0 %v1119
    %1542 = vmatprep.subr.mxu0 0.0
    %1543 = vmatpush1.msra.mxu0 %v1120
    %1544 = vmatprep.subr.mxu0 0.0
    %1545 = vmatpush1.msra.mxu0 %v1121
    %1546 = vmatprep.subr.mxu0 0.0
    %1547 = vmatpush1.msra.mxu0 %v1122
    %1548 = vmatprep.subr.mxu0 0.0
    %1549 = vmatpush1.msra.mxu0 0.0
    %1550 = vmatprep.subr.mxu0 0.0
    %1551 = vmatpush1.msra.mxu0 0.0
    %1552 = vmatprep.subr.mxu0 0.0
    %1553 = vmatpush1.msra.mxu0 0.0
    %1554 = vmatprep.subr.mxu0 0.0
    %1555 = vmatpush1.msra.mxu0 0.0
    %1556 = vmatprep.subr.mxu0 0.0
    %1557 = vmatpush1.msra.mxu0 0.0
    %1558 = vmatprep.subr.mxu0 0.0
    %1559 = vmatpush1.msra.mxu0 0.0
    %1560 = vmatprep.subr.mxu0 0.0
    %1561 = vmatpush1.msra.mxu0 0.0
    %1562 = vmatprep.subr.mxu0 0.0
    %1563 = vmatpush1.msra.mxu0 0.0
    %1564 = vmatprep.subr.mxu0 0.0
    %1565 = vmatpush1.msra.mxu0 0.0
    %1566 = vmatprep.subr.mxu0 0.0
    %1567 = vmatpush1.msra.mxu0 0.0
    %1568 = vmatprep.subr.mxu0 0.0
    %1569 = vmatpush1.msra.mxu0 0.0
    %1570 = vmatprep.subr.mxu0 0.0
    %1571 = vmatpush1.msra.mxu0 0.0
    %1572 = vmatprep.subr.mxu0 0.0
    %1573 = vmatpush1.msra.mxu0 0.0
    %1574 = vmatprep.subr.mxu0 0.0
    %1575 = vmatpush1.msra.mxu0 0.0
    %1576 = vmatprep.subr.mxu0 0.0
    %1577 = vmatpush1.msra.mxu0 0.0
    %1578 = vmatprep.subr.mxu0 0.0
    %1579 = vmatpush1.msra.mxu0 0.0
    %1580 = vmatprep.subr.mxu0 0.0
    %1581 = vmatpush1.msra.mxu0 0.0
    %1582 = vmatprep.subr.mxu0 0.0
    %1583 = vmatpush1.msra.mxu0 0.0
    %1584 = vmatprep.subr.mxu0 0.0
    %1585 = vmatpush1.msra.mxu0 0.0
    %1586 = vmatprep.subr.mxu0 0.0
    %1587 = vmatpush1.msra.mxu0 0.0
    %1588 = vmatprep.subr.mxu0 0.0
    %1589 = vmatpush1.msra.mxu0 0.0
    %1590 = vmatprep.subr.mxu0 0.0
    %1591 = vmatpush1.msra.mxu0 0.0
    %1592 = vmatprep.subr.mxu0 0.0
    %1593 = vmatpush1.msra.mxu0 0.0
    %1594 = vmatprep.subr.mxu0 0.0
    %1595 = vmatpush1.msra.mxu0 0.0
    %1596 = vmatprep.subr.mxu0 0.0
    %1597 = vmatpush1.msra.mxu0 0.0
    %1598 = vmatprep.subr.mxu0 0.0
    %1599 = vmatpush1.msra.mxu0 0.0
    %1600 = vmatprep.subr.mxu0 0.0
    %1601 = vmatpush1.msra.mxu0 0.0
    %1602 = vmatprep.subr.mxu0 0.0
    %1603 = vmatpush1.msra.mxu0 0.0
    %1604 = vmatprep.mubr.f32.mxu0 0.0
    %1605 = vmatmul.mubr.f32.gmra.mrb[0].mxu0 %v1538
    %v1606 = vpop.f32.mrb[0].mxu0
    %v1607 = vadd.f32 %v1128, %v1606
    %v1608 = vpop.f32.mrb[0].mxu0
    %1609 = vdwg.mxu0
    %v1610 = vxor.u32 %v1607, 2147483648
    %v1611 = vmul.f32 %v1610, 1.442695
    %v1612 = vpow.pop %v1611
    %v1613 = vadd.f32 %v1612, 1.0
    %v1614 = vrcp.pop %v1613
    %v1615 = vmul.f32 1.0, %v1614
    %v1616 = vtanh.pop %v1607
    %v1617 = vmul.f32 %v1615, %v1525
    %1619 = vrot.lane.b32.xlu0 %v1616, 32
    %v1620 = vpop.permute.xlu0 %1619
    %v1622 = vmul.f32 %v1615, %v1620
    %1624 = vrot.lane.b32.xlu0 %v1622, 32
    %v1625 = vpop.permute.xlu0 %1624
    %v1627 = vadd.f32 %v1617, %v1625
    %v1628 = vtanh.pop %v1627
    %1630 = vrot.lane.b32.xlu0 %v1628, 32
    %v1631 = vpop.permute.xlu0 %1630
    %v1633 = vmul.f32 %v1615, %v1631
    %1635 = vrot.lane.b32.xlu0 %v1633, 64
    %v1636 = vpop.permute.xlu0 %1635
    %s1638 = scalar_lea.vmem [#allocation3], 32
    %1639 = vst.msk [vmem:[%s1638] sm:$0xff] %vm137, %v1636
    %v1640 = vsel %vm137, %v1636, 0
    %1642 = vmatprep.subr.mxu0 0.0
    %1643 = vmatpush1.msra.mxu0 %v1119
    %1644 = vmatprep.subr.mxu0 0.0
    %1645 = vmatpush1.msra.mxu0 %v1120
    %1646 = vmatprep.subr.mxu0 0.0
    %1647 = vmatpush1.msra.mxu0 %v1121
    %1648 = vmatprep.subr.mxu0 0.0
    %1649 = vmatpush1.msra.mxu0 %v1122
    %1650 = vmatprep.subr.mxu0 0.0
    %1651 = vmatpush1.msra.mxu0 0.0
    %1652 = vmatprep.subr.mxu0 0.0
    %1653 = vmatpush1.msra.mxu0 0.0
    %1654 = vmatprep.subr.mxu0 0.0
    %1655 = vmatpush1.msra.mxu0 0.0
    %1656 = vmatprep.subr.mxu0 0.0
    %1657 = vmatpush1.msra.mxu0 0.0
    %1658 = vmatprep.subr.mxu0 0.0
    %1659 = vmatpush1.msra.mxu0 0.0
    %1660 = vmatprep.subr.mxu0 0.0
    %1661 = vmatpush1.msra.mxu0 0.0
    %1662 = vmatprep.subr.mxu0 0.0
    %1663 = vmatpush1.msra.mxu0 0.0
    %1664 = vmatprep.subr.mxu0 0.0
    %1665 = vmatpush1.msra.mxu0 0.0
    %1666 = vmatprep.subr.mxu0 0.0
    %1667 = vmatpush1.msra.mxu0 0.0
    %1668 = vmatprep.subr.mxu0 0.0
    %1669 = vmatpush1.msra.mxu0 0.0
    %1670 = vmatprep.subr.mxu0 0.0
    %1671 = vmatpush1.msra.mxu0 0.0
    %1672 = vmatprep.subr.mxu0 0.0
    %1673 = vmatpush1.msra.mxu0 0.0
    %1674 = vmatprep.subr.mxu0 0.0
    %1675 = vmatpush1.msra.mxu0 0.0
    %1676 = vmatprep.subr.mxu0 0.0
    %1677 = vmatpush1.msra.mxu0 0.0
    %1678 = vmatprep.subr.mxu0 0.0
    %1679 = vmatpush1.msra.mxu0 0.0
    %1680 = vmatprep.subr.mxu0 0.0
    %1681 = vmatpush1.msra.mxu0 0.0
    %1682 = vmatprep.subr.mxu0 0.0
    %1683 = vmatpush1.msra.mxu0 0.0
    %1684 = vmatprep.subr.mxu0 0.0
    %1685 = vmatpush1.msra.mxu0 0.0
    %1686 = vmatprep.subr.mxu0 0.0
    %1687 = vmatpush1.msra.mxu0 0.0
    %1688 = vmatprep.subr.mxu0 0.0
    %1689 = vmatpush1.msra.mxu0 0.0
    %1690 = vmatprep.subr.mxu0 0.0
    %1691 = vmatpush1.msra.mxu0 0.0
    %1692 = vmatprep.subr.mxu0 0.0
    %1693 = vmatpush1.msra.mxu0 0.0
    %1694 = vmatprep.subr.mxu0 0.0
    %1695 = vmatpush1.msra.mxu0 0.0
    %1696 = vmatprep.subr.mxu0 0.0
    %1697 = vmatpush1.msra.mxu0 0.0
    %1698 = vmatprep.subr.mxu0 0.0
    %1699 = vmatpush1.msra.mxu0 0.0
    %1700 = vmatprep.subr.mxu0 0.0
    %1701 = vmatpush1.msra.mxu0 0.0
    %1702 = vmatprep.subr.mxu0 0.0
    %1703 = vmatpush1.msra.mxu0 0.0
    %1704 = vmatprep.subr.mxu0 0.0
    %1705 = vmatpush1.msra.mxu0 0.0
    %1706 = vmatprep.mubr.f32.mxu0 0.0
    %1707 = vmatmul.mubr.f32.gmra.mrb[0].mxu0 %v1640
    %v1708 = vpop.f32.mrb[0].mxu0
    %v1709 = vadd.f32 %v1128, %v1708
    %v1710 = vpop.f32.mrb[0].mxu0
    %1711 = vdwg.mxu0
    %v1712 = vxor.u32 %v1709, 2147483648
    %v1713 = vmul.f32 %v1712, 1.442695
    %v1714 = vpow.pop %v1713
    %v1715 = vadd.f32 %v1714, 1.0
    %v1716 = vrcp.pop %v1715
    %v1717 = vmul.f32 1.0, %v1716
    %v1718 = vtanh.pop %v1709
    %v1719 = vmul.f32 %v1717, %v1627
    %1721 = vrot.lane.b32.xlu0 %v1718, 32
    %v1722 = vpop.permute.xlu0 %1721
    %v1724 = vmul.f32 %v1717, %v1722
    %1726 = vrot.lane.b32.xlu0 %v1724, 32
    %v1727 = vpop.permute.xlu0 %1726
    %v1729 = vadd.f32 %v1719, %v1727
    %v1730 = vtanh.pop %v1729
    %1732 = vrot.lane.b32.xlu0 %v1730, 32
    %v1733 = vpop.permute.xlu0 %1732
    %v1735 = vmul.f32 %v1717, %v1733
    %1737 = vrot.lane.b32.xlu0 %v1735, 64
    %v1738 = vpop.permute.xlu0 %1737
    %s1740 = scalar_lea.vmem [#allocation3], 40
    %1741 = vst.msk [vmem:[%s1740] sm:$0xff] %vm137, %v1738
    %v1742 = vsel %vm137, %v1738, 0
    %1744 = vmatprep.subr.mxu0 0.0
    %1745 = vmatpush1.msra.mxu0 %v1119
    %1746 = vmatprep.subr.mxu0 0.0
    %1747 = vmatpush1.msra.mxu0 %v1120
    %1748 = vmatprep.subr.mxu0 0.0
    %1749 = vmatpush1.msra.mxu0 %v1121
    %1750 = vmatprep.subr.mxu0 0.0
    %1751 = vmatpush1.msra.mxu0 %v1122
    %1752 = vmatprep.subr.mxu0 0.0
    %1753 = vmatpush1.msra.mxu0 0.0
    %1754 = vmatprep.subr.mxu0 0.0
    %1755 = vmatpush1.msra.mxu0 0.0
    %1756 = vmatprep.subr.mxu0 0.0
    %1757 = vmatpush1.msra.mxu0 0.0
    %1758 = vmatprep.subr.mxu0 0.0
    %1759 = vmatpush1.msra.mxu0 0.0
    %1760 = vmatprep.subr.mxu0 0.0
    %1761 = vmatpush1.msra.mxu0 0.0
    %1762 = vmatprep.subr.mxu0 0.0
    %1763 = vmatpush1.msra.mxu0 0.0
    %1764 = vmatprep.subr.mxu0 0.0
    %1765 = vmatpush1.msra.mxu0 0.0
    %1766 = vmatprep.subr.mxu0 0.0
    %1767 = vmatpush1.msra.mxu0 0.0
    %1768 = vmatprep.subr.mxu0 0.0
    %1769 = vmatpush1.msra.mxu0 0.0
    %1770 = vmatprep.subr.mxu0 0.0
    %1771 = vmatpush1.msra.mxu0 0.0
    %1772 = vmatprep.subr.mxu0 0.0
    %1773 = vmatpush1.msra.mxu0 0.0
    %1774 = vmatprep.subr.mxu0 0.0
    %1775 = vmatpush1.msra.mxu0 0.0
    %1776 = vmatprep.subr.mxu0 0.0
    %1777 = vmatpush1.msra.mxu0 0.0
    %1778 = vmatprep.subr.mxu0 0.0
    %1779 = vmatpush1.msra.mxu0 0.0
    %1780 = vmatprep.subr.mxu0 0.0
    %1781 = vmatpush1.msra.mxu0 0.0
    %1782 = vmatprep.subr.mxu0 0.0
    %1783 = vmatpush1.msra.mxu0 0.0
    %1784 = vmatprep.subr.mxu0 0.0
    %1785 = vmatpush1.msra.mxu0 0.0
    %1786 = vmatprep.subr.mxu0 0.0
    %1787 = vmatpush1.msra.mxu0 0.0
    %1788 = vmatprep.subr.mxu0 0.0
    %1789 = vmatpush1.msra.mxu0 0.0
    %1790 = vmatprep.subr.mxu0 0.0
    %1791 = vmatpush1.msra.mxu0 0.0
    %1792 = vmatprep.subr.mxu0 0.0
    %1793 = vmatpush1.msra.mxu0 0.0
    %1794 = vmatprep.subr.mxu0 0.0
    %1795 = vmatpush1.msra.mxu0 0.0
    %1796 = vmatprep.subr.mxu0 0.0
    %1797 = vmatpush1.msra.mxu0 0.0
    %1798 = vmatprep.subr.mxu0 0.0
    %1799 = vmatpush1.msra.mxu0 0.0
    %1800 = vmatprep.subr.mxu0 0.0
    %1801 = vmatpush1.msra.mxu0 0.0
    %1802 = vmatprep.subr.mxu0 0.0
    %1803 = vmatpush1.msra.mxu0 0.0
    %1804 = vmatprep.subr.mxu0 0.0
    %1805 = vmatpush1.msra.mxu0 0.0
    %1806 = vmatprep.subr.mxu0 0.0
    %1807 = vmatpush1.msra.mxu0 0.0
    %1808 = vmatprep.mubr.f32.mxu0 0.0
    %1809 = vmatmul.mubr.f32.gmra.mrb[0].mxu0 %v1742
    %v1810 = vpop.f32.mrb[0].mxu0
    %v1811 = vadd.f32 %v1128, %v1810
    %v1812 = vpop.f32.mrb[0].mxu0
    %1813 = vdwg.mxu0
    %v1814 = vxor.u32 %v1811, 2147483648
    %v1815 = vmul.f32 %v1814, 1.442695
    %v1816 = vpow.pop %v1815
    %v1817 = vadd.f32 %v1816, 1.0
    %v1818 = vrcp.pop %v1817
    %v1819 = vmul.f32 1.0, %v1818
    %v1820 = vtanh.pop %v1811
    %v1821 = vmul.f32 %v1819, %v1729
    %1823 = vrot.lane.b32.xlu0 %v1820, 32
    %v1824 = vpop.permute.xlu0 %1823
    %v1826 = vmul.f32 %v1819, %v1824
    %1828 = vrot.lane.b32.xlu0 %v1826, 32
    %v1829 = vpop.permute.xlu0 %1828
    %v1831 = vadd.f32 %v1821, %v1829
    %v1832 = vtanh.pop %v1831
    %1834 = vrot.lane.b32.xlu0 %v1832, 32
    %v1835 = vpop.permute.xlu0 %1834
    %v1837 = vmul.f32 %v1819, %v1835
    %1839 = vrot.lane.b32.xlu0 %v1837, 64
    %v1840 = vpop.permute.xlu0 %1839
    %s1842 = scalar_lea.vmem [#allocation3], 48
    %1843 = vst.msk [vmem:[%s1842] sm:$0xff] %vm137, %v1840
    %v1844 = vsel %vm137, %v1840, 0
    %1846 = vmatprep.subr.mxu0 0.0
    %1847 = vmatpush1.msra.mxu0 %v1119
    %1848 = vmatprep.subr.mxu0 0.0
    %1849 = vmatpush1.msra.mxu0 %v1120
    %1850 = vmatprep.subr.mxu0 0.0
    %1851 = vmatpush1.msra.mxu0 %v1121
    %1852 = vmatprep.subr.mxu0 0.0
    %1853 = vmatpush1.msra.mxu0 %v1122
    %1854 = vmatprep.subr.mxu0 0.0
    %1855 = vmatpush1.msra.mxu0 0.0
    %1856 = vmatprep.subr.mxu0 0.0
    %1857 = vmatpush1.msra.mxu0 0.0
    %1858 = vmatprep.subr.mxu0 0.0
    %1859 = vmatpush1.msra.mxu0 0.0
    %1860 = vmatprep.subr.mxu0 0.0
    %1861 = vmatpush1.msra.mxu0 0.0
    %1862 = vmatprep.subr.mxu0 0.0
    %1863 = vmatpush1.msra.mxu0 0.0
    %1864 = vmatprep.subr.mxu0 0.0
    %1865 = vmatpush1.msra.mxu0 0.0
    %1866 = vmatprep.subr.mxu0 0.0
    %1867 = vmatpush1.msra.mxu0 0.0
    %1868 = vmatprep.subr.mxu0 0.0
    %1869 = vmatpush1.msra.mxu0 0.0
    %1870 = vmatprep.subr.mxu0 0.0
    %1871 = vmatpush1.msra.mxu0 0.0
    %1872 = vmatprep.subr.mxu0 0.0
    %1873 = vmatpush1.msra.mxu0 0.0
    %1874 = vmatprep.subr.mxu0 0.0
    %1875 = vmatpush1.msra.mxu0 0.0
    %1876 = vmatprep.subr.mxu0 0.0
    %1877 = vmatpush1.msra.mxu0 0.0
    %1878 = vmatprep.subr.mxu0 0.0
    %1879 = vmatpush1.msra.mxu0 0.0
    %1880 = vmatprep.subr.mxu0 0.0
    %1881 = vmatpush1.msra.mxu0 0.0
    %1882 = vmatprep.subr.mxu0 0.0
    %1883 = vmatpush1.msra.mxu0 0.0
    %1884 = vmatprep.subr.mxu0 0.0
    %1885 = vmatpush1.msra.mxu0 0.0
    %1886 = vmatprep.subr.mxu0 0.0
    %1887 = vmatpush1.msra.mxu0 0.0
    %1888 = vmatprep.subr.mxu0 0.0
    %1889 = vmatpush1.msra.mxu0 0.0
    %1890 = vmatprep.subr.mxu0 0.0
    %1891 = vmatpush1.msra.mxu0 0.0
    %1892 = vmatprep.subr.mxu0 0.0
    %1893 = vmatpush1.msra.mxu0 0.0
    %1894 = vmatprep.subr.mxu0 0.0
    %1895 = vmatpush1.msra.mxu0 0.0
    %1896 = vmatprep.subr.mxu0 0.0
    %1897 = vmatpush1.msra.mxu0 0.0
    %1898 = vmatprep.subr.mxu0 0.0
    %1899 = vmatpush1.msra.mxu0 0.0
    %1900 = vmatprep.subr.mxu0 0.0
    %1901 = vmatpush1.msra.mxu0 0.0
    %1902 = vmatprep.subr.mxu0 0.0
    %1903 = vmatpush1.msra.mxu0 0.0
    %1904 = vmatprep.subr.mxu0 0.0
    %1905 = vmatpush1.msra.mxu0 0.0
    %1906 = vmatprep.subr.mxu0 0.0
    %1907 = vmatpush1.msra.mxu0 0.0
    %1908 = vmatprep.subr.mxu0 0.0
    %1909 = vmatpush1.msra.mxu0 0.0
    %1910 = vmatprep.mubr.f32.mxu0 0.0
    %1911 = vmatmul.mubr.f32.gmra.mrb[0].mxu0 %v1844
    %v1912 = vpop.f32.mrb[0].mxu0
    %v1913 = vadd.f32 %v1128, %v1912
    %v1914 = vpop.f32.mrb[0].mxu0
    %1915 = vdwg.mxu0
    %v1916 = vxor.u32 %v1913, 2147483648
    %v1917 = vmul.f32 %v1916, 1.442695
    %v1918 = vpow.pop %v1917
    %v1919 = vadd.f32 %v1918, 1.0
    %v1920 = vrcp.pop %v1919
    %v1921 = vmul.f32 1.0, %v1920
    %v1922 = vtanh.pop %v1913
    %v1923 = vmul.f32 %v1921, %v1831
    %1925 = vrot.lane.b32.xlu0 %v1922, 32
    %v1926 = vpop.permute.xlu0 %1925
    %v1928 = vmul.f32 %v1921, %v1926
    %1930 = vrot.lane.b32.xlu0 %v1928, 32
    %v1931 = vpop.permute.xlu0 %1930
    %v1933 = vadd.f32 %v1923, %v1931
    %v1934 = vtanh.pop %v1933
    %1936 = vrot.lane.b32.xlu0 %v1934, 32
    %v1937 = vpop.permute.xlu0 %1936
    %v1939 = vmul.f32 %v1921, %v1937
    %1941 = vrot.lane.b32.xlu0 %v1939, 64
    %v1942 = vpop.permute.xlu0 %1941
    %s1944 = scalar_lea.vmem [#allocation3], 56
    %1945 = vst.msk [vmem:[%s1944] sm:$0xff] %vm137, %v1942
    %v1946 = vld [vmem:[%s10] sm:$0x1]
    %v1947 = vld [vmem:[#allocation3] sm:$0xff]
    %v1948 = vld [vmem:[#allocation3 + $0x8] sm:$0xff]
    %v1949 = vld [vmem:[#allocation3 + $0x10] sm:$0xff]
    %v1950 = vld [vmem:[#allocation3 + $0x18] sm:$0xff]
    %v1951 = vld [vmem:[#allocation3 + $0x20] sm:$0xff]
    %v1952 = vld [vmem:[#allocation3 + $0x28] sm:$0xff]
    %v1953 = vld [vmem:[#allocation3 + $0x30] sm:$0xff]
    %v1954 = vld [vmem:[#allocation3 + $0x38] sm:$0xff]
    %v1956 = vlaneseq
    %v1957 = vshrl.u32 %v1956, 7
    %v1958 = vsub.s32 0, %v1957
    %v1959 = vrot.slane %v1946, %v1958
    %v1961 = vmul.f32 %v1947, %v1959
    %v1962 = vmul.f32 %v1948, %v1959
    %v1963 = vmul.f32 %v1949, %v1959
    %v1964 = vmul.f32 %v1950, %v1959
    %v1965 = vmul.f32 %v1951, %v1959
    %v1966 = vmul.f32 %v1952, %v1959
    %v1967 = vmul.f32 %v1953, %v1959
    %v1968 = vmul.f32 %v1954, %v1959
    %v1969 = vsel %vm137, %v1961, 0.0
    %1970 = vadd.xlane.f32.xlu0 %v1969
    %v1971 = vpop.xlane.xlu0 %1970
    %v1972 = vsel %vm137, %v1962, 0.0
    %1973 = vadd.xlane.f32.xlu0 %v1972
    %v1974 = vpop.xlane.xlu0 %1973
    %v1975 = vsel %vm137, %v1963, 0.0
    %1976 = vadd.xlane.f32.xlu0 %v1975
    %v1977 = vpop.xlane.xlu0 %1976
    %v1978 = vsel %vm137, %v1964, 0.0
    %1979 = vadd.xlane.f32.xlu0 %v1978
    %v1980 = vpop.xlane.xlu0 %1979
    %v1981 = vsel %vm137, %v1965, 0.0
    %1982 = vadd.xlane.f32.xlu0 %v1981
    %v1983 = vpop.xlane.xlu0 %1982
    %v1984 = vsel %vm137, %v1966, 0.0
    %1985 = vadd.xlane.f32.xlu0 %v1984
    %v1986 = vpop.xlane.xlu0 %1985
    %v1987 = vsel %vm137, %v1967, 0.0
    %1988 = vadd.xlane.f32.xlu0 %v1987
    %v1989 = vpop.xlane.xlu0 %1988
    %v1990 = vsel %vm137, %v1968, 0.0
    %1991 = vadd.xlane.f32.xlu0 %v1990
    %v1992 = vpop.xlane.xlu0 %1991
    %v1993 = vld [vmem:[#allocation4] sm:$0x1]
    %v1995 = vlaneseq
    %v1996 = vshrl.u32 %v1995, 7
    %v1997 = vsub.s32 0, %v1996
    %v1998 = vrot.slane %v1993, %v1997
    %v2000 = vadd.f32 %v1971, %v1998
    %v2001 = vadd.f32 %v1974, %v1998
    %v2002 = vadd.f32 %v1977, %v1998
    %v2003 = vadd.f32 %v1980, %v1998
    %v2004 = vadd.f32 %v1983, %v1998
    %v2005 = vadd.f32 %v1986, %v1998
    %v2006 = vadd.f32 %v1989, %v1998
    %v2007 = vadd.f32 %v1992, %v1998
    %vm2008 = vcmask 7168
    %2009 = vst.msk [vmem:[%s12] sm:$0xff] %vm2008, %v2000
    %2010 = vst.msk [vmem:[%s12 + $0x8] sm:$0xff] %vm2008, %v2001
    %2011 = vst.msk [vmem:[%s12 + $0x10] sm:$0xff] %vm2008, %v2002
    %2012 = vst.msk [vmem:[%s12 + $0x18] sm:$0xff] %vm2008, %v2003
    %2013 = vst.msk [vmem:[%s12 + $0x20] sm:$0xff] %vm2008, %v2004
    %2014 = vst.msk [vmem:[%s12 + $0x28] sm:$0xff] %vm2008, %v2005
    %2015 = vst.msk [vmem:[%s12 + $0x30] sm:$0xff] %vm2008, %v2006
    %2016 = vst.msk [vmem:[%s12 + $0x38] sm:$0xff] %vm2008, %v2007
    // Predicated region
    $region50: #{tpu_custom_call.1} parent=1 // pred_check
      _
    $region51: #{tpu_custom_call.1} parent=1 // pred_check_branch
      %2018 = sbr.rel (0) target = $region53
    $region52: #{tpu_custom_call.1} parent=1 // pred_region
      _
    $region53: #{tpu_custom_call.1} parent=1 // pred_fallthru
      _
    // Predicated region
    $region54: #{tpu_custom_call.1} parent=1 // pred_check
      _
    $region55: #{tpu_custom_call.1} parent=1 // pred_check_branch
      %2020 = sbr.rel (0) target = $region57
    $region56: #{tpu_custom_call.1} parent=1 // pred_region
      %s2022 = ssub.s32 128, 128
      %2023 = vsyncadd [#allocation6], %s2022
      %s2025 = sshll.u32 [#allocation5], 4
      %s2026 = int_to_ptr.vmem [resolvable:$true] %s2025
      %2028 = dma.vmem_to_hbm [thread:$0]  %s2026, 128, %s13, [#allocation6]
    $region57: #{tpu_custom_call.1} parent=1 // pred_fallthru
      _
    // Predicated region
    $region58: #{tpu_custom_call.1} parent=1 // pred_check
      _
    $region59: #{tpu_custom_call.1} parent=1 // pred_check_branch
      %2030 = sbr.rel (0) target = $region61
    $region60: #{tpu_custom_call.1} parent=1 // pred_region
      _
    $region61: #{tpu_custom_call.1} parent=1 // pred_fallthru
      _
    // Predicated region
    $region62: #{tpu_custom_call.1} parent=1 // pred_check
      _
    $region63: #{tpu_custom_call.1} parent=1 // pred_check_branch
      %2032 = sbr.rel (0) target = $region65
    $region64: #{tpu_custom_call.1} parent=1 // pred_region
      %2033 = dma.done [#allocation6], 128
    $region65: #{tpu_custom_call.1} parent=1 // pred_fallthru
      _
    %2034 = vsyncpa [#allocation6], 1

</llo_original>
